<compile_context>
chip_gen: v7x
topology: tpu7x:2x2x1
jax: 0.10.0
libtpu: 0.0.40
codegen_flags: <defaults>
</compile_context>

<pallas_src>
import functools
import math

import jax
import jax.numpy as jnp
import numpy as np
from jax.experimental import pallas as pl
from jax.experimental.pallas import tpu as pltpu


def _residual_block_kernel(x_ref, cond_ref, aux_ref,
                           wfused_ref, bfused_ref, wout_ref, bout_ref,
                           out_res_ref, out_skip_ref, slab_ref,
                           *, dilation, c, e, t_tile):
    d = dilation
    x = x_ref[0]                                   # (C, TT)   f32
    aux = aux_ref[0, 0]                            # (C, AUXL) f32
    dproj = aux[:, 0:1]                            # (C, 1)    diffusion projection
    halo_l = aux[:, 1:1 + d]                       # (C, d)    y just left of the tile
    halo_r = aux[:, 1 + d:1 + 2 * d]               # (C, d)    y just right of the tile

    y = x + dproj                                  # (C, TT)   f32

    cdt = slab_ref.dtype
    # Fused contraction slab (3C+E, TT) in the MXU compute dtype:
    #   rows [0:C]     = y[t - d]     (left edge from halo / zeros)
    #   rows [C:2C]    = y[t]
    #   rows [2C:3C]   = y[t + d]     (right edge from halo / zeros)
    #   rows [3C:3C+E] = conditioner
    slab_ref[0:c, :] = pltpu.roll(y, shift=d, axis=1).astype(cdt)
    slab_ref[0:c, 0:d] = halo_l.astype(cdt)
    slab_ref[c:2 * c, :] = y.astype(cdt)
    slab_ref[2 * c:3 * c, :] = pltpu.roll(y, shift=t_tile - d, axis=1).astype(cdt)
    slab_ref[2 * c:3 * c, t_tile - d:t_tile] = halo_r.astype(cdt)
    slab_ref[3 * c:3 * c + e, :] = cond_ref[0].astype(cdt)

    # Single fused MXU matmul: 3 dilated-conv taps + conditioner projection.
    pre = jnp.dot(wfused_ref[...], slab_ref[...],
                  preferred_element_type=jnp.float32) + bfused_ref[...]   # (2C, TT)

    gate = pre[0:c]
    filt = pre[c:2 * c]
    z = jax.nn.sigmoid(gate) * jnp.tanh(filt)                             # (C, TT) f32

    # output_projection (k=1 conv -> matmul), bf16 operands / f32 accumulation.
    out = jnp.dot(wout_ref[...], z.astype(wout_ref.dtype),
                  preferred_element_type=jnp.float32) + bout_ref[...]     # (2C, TT)

    inv_sqrt2 = 1.0 / math.sqrt(2.0)
    out_res_ref[0] = ((x + out[0:c]) * inv_sqrt2).astype(out_res_ref.dtype)
    out_skip_ref[0] = out[c:2 * c].astype(out_skip_ref.dtype)


def _pick_t_tile(T, d):
    # Prefer large, lane-dense tiles (per-grid-step overhead dominates <=256).
    for cand in (4096, 2048, 1024, 512, 256, 128):
        if T % cand == 0 and cand > d:
            return cand
    # No exact divisor: T will be padded up to a multiple of the chosen tile.
    t = min(1024, 128 * pl.cdiv(T, 128))
    while t <= d:
        t *= 2
    return t


def residual_block(x, conditioner, diffusion_step, params, *, dilation,
                   t_tile=None, compute_dtype=jnp.bfloat16):
    """x: (B, C, T), conditioner: (B, E, T), diffusion_step: (B, C)."""
    wd, wconv, bconv, wcond, bcond, wout, bout = params
    B, C, T_in = x.shape
    E = conditioner.shape[1]
    d = dilation

    x = x.astype(jnp.float32)
    conditioner = conditioner.astype(jnp.float32)

    # ---- time tile: lane-dense (multiple of 128) and larger than the halo ----
    if t_tile is None:
        t_tile = _pick_t_tile(T_in, d)
    assert t_tile % 128 == 0, "time tile must be a multiple of 128 lanes"
    assert d < t_tile, "dilation must be smaller than the time tile"
    nt = pl.cdiv(T_in, t_tile)
    T = nt * t_tile
    pad = T - T_in

    # ---- hoisted diffusion projection (tiny batched XLA matmul) --------------
    dproj = (diffusion_step @ wd.T).astype(jnp.float32)                    # (B, C)

    # ---- pad T so every tile is lane-dense.  x is padded with -dproj so that
    #      y = x + dproj is exactly zero in the pad region (== conv zero pad).
    if pad:
        x = jnp.concatenate(
            [x, jnp.broadcast_to(-dproj[:, :, None], (B, C, pad))], axis=-1)
        conditioner = jnp.pad(conditioner, ((0, 0), (0, 0), (0, pad)))

    # ---- fused conv(3 taps) + conditioner weights / biases (bf16 operands) ---
    wfused = jnp.concatenate([wconv[0], wconv[1], wconv[2], wcond],
                             axis=1).astype(compute_dtype)                 # (2C, 3C+E)
    bfused = (bconv + bcond).astype(jnp.float32)                           # (2C, 1)
    wout_c = wout.astype(compute_dtype)                                    # (2C, C)
    bout_c = bout.astype(jnp.float32)                                      # (2C, 1)

    # ---- merged per-(b, t) auxiliary block: [dproj | left halo | right halo],
    #      lane-padded to a multiple of 128, built in one vectorized pass.
    aux_l = 128 * pl.cdiv(2 * d + 1, 128)
    xr = x.reshape(B, C, nt, t_tile)
    dpr = dproj[:, :, None, None]                                          # (B, C, 1, 1)
    left = jnp.pad(xr[:, :, :-1, t_tile - d:] + dpr,
                   ((0, 0), (0, 0), (1, 0), (0, 0)))                       # (B, C, nt, d)
    right = jnp.pad(xr[:, :, 1:, :d] + dpr,
                    ((0, 0), (0, 0), (0, 1), (0, 0)))                      # (B, C, nt, d)
    aux = jnp.concatenate(
        [jnp.broadcast_to(dproj[:, None, :, None], (B, nt, C, 1)),
         jnp.transpose(left, (0, 2, 1, 3)),
         jnp.transpose(right, (0, 2, 1, 3))], axis=-1)                     # (B, nt, C, 2d+1)
    aux = jnp.pad(aux, ((0, 0), (0, 0), (0, 0), (0, aux_l - (2 * d + 1))))

    # ---- VMEM budget derived from block sizes, capped below v7x's 64 MiB -----
    cbytes = np.dtype(compute_dtype).itemsize
    io_bytes = (C * t_tile + E * t_tile + C * aux_l + 2 * C * t_tile) * 4
    w_bytes = ((2 * C) * (3 * C + E) + (2 * C) * C) * cbytes + 2 * (2 * C) * 4
    slab_bytes = (3 * C + E) * t_tile * cbytes
    vmem_bytes = int(min(max(4 * (io_bytes + w_bytes) + slab_bytes, 16 << 20),
                         32 << 20))

    def full_spec(a):
        nd = a.ndim
        return pl.BlockSpec(a.shape, lambda b, t: (0,) * nd)

    kernel = functools.partial(_residual_block_kernel,
                               dilation=d, c=C, e=E, t_tile=t_tile)

    out_shapes = (jax.ShapeDtypeStruct((B, C, T), x.dtype),
                  jax.ShapeDtypeStruct((B, C, T), x.dtype))

    res, skip = pl.pallas_call(
        kernel,
        out_shape=out_shapes,
        grid_spec=pltpu.PrefetchScalarGridSpec(
            num_scalar_prefetch=0,
            grid=(B, nt),
            in_specs=[
                pl.BlockSpec((1, C, t_tile), lambda b, t: (b, 0, t)),        # x
                pl.BlockSpec((1, E, t_tile), lambda b, t: (b, 0, t)),        # cond
                pl.BlockSpec((1, 1, C, aux_l), lambda b, t: (b, t, 0, 0)),   # dproj+halo
                full_spec(wfused), full_spec(bfused),
                full_spec(wout_c), full_spec(bout_c),
            ],
            out_specs=[
                pl.BlockSpec((1, C, t_tile), lambda b, t: (b, 0, t)),
                pl.BlockSpec((1, C, t_tile), lambda b, t: (b, 0, t)),
            ],
            scratch_shapes=[pltpu.VMEM((3 * C + E, t_tile), compute_dtype)],
        ),
        compiler_params=pltpu.CompilerParams(
            dimension_semantics=("parallel", "parallel"),
            vmem_limit_bytes=vmem_bytes,
        ),
    )(x, conditioner, aux, wfused, bfused, wout_c, bout_c)

    if pad:
        res = res[:, :, :T_in]
        skip = skip[:, :, :T_in]
    return res, skip


def reference(x, conditioner, diffusion_step, params, *, dilation):
    """Pure-JAX reference matching the PyTorch forward semantics."""
    wd, wconv, bconv, wcond, bcond, wout, bout = params
    B, C, T = x.shape
    dproj = diffusion_step @ wd.T                         # (B, C)
    y = x + dproj[:, :, None]
    yp = jnp.pad(y, ((0, 0), (0, 0), (dilation, dilation)))
    conv = jnp.broadcast_to(bconv[None], (B, 2 * C, T)).astype(jnp.float32)
    for k in range(3):
        conv = conv + jnp.einsum('oc,bct->bot', wconv[k],
                                 yp[:, :, k * dilation:k * dilation + T])
    cond_p = jnp.einsum('oe,bet->bot', wcond, conditioner) + bcond[None]
    y2 = conv + cond_p
    gate, filt = y2[:, :C], y2[:, C:]
    z = jax.nn.sigmoid(gate) * jnp.tanh(filt)
    out = jnp.einsum('oc,bct->bot', wout, z) + bout[None]
    residual, skip = out[:, :C], out[:, C:]
    return (x + residual) / math.sqrt(2.0), skip


def init_params(key, d_encoder, residual_channels):
    C, E = residual_channels, d_encoder
    ks = jax.random.split(key, 7)
    # diffusion_projection: Linear(C, C, bias=False), xavier_uniform
    lim = math.sqrt(6.0 / (C + C))
    wd = jax.random.uniform(ks[0], (C, C), jnp.float32, -lim, lim)
    # conv_layer: Conv1d(C, 2C, k=3), kaiming_normal  (stored as (3, 2C, C))
    std = math.sqrt(2.0 / (C * 3))
    wconv = jax.random.normal(ks[1], (3, 2 * C, C), jnp.float32) * std
    bconv = jax.random.normal(ks[2], (2 * C, 1), jnp.float32) * 0.02
    # conditioner_projection: Conv1d(E, 2C, k=1)
    std = math.sqrt(2.0 / E)
    wcond = jax.random.normal(ks[3], (2 * C, E), jnp.float32) * std
    bcond = jax.random.normal(ks[4], (2 * C, 1), jnp.float32) * 0.02
    # output_projection: Conv1d(C, 2C, k=1)
    std = math.sqrt(2.0 / C)
    wout = jax.random.normal(ks[5], (2 * C, C), jnp.float32) * std
    bout = jax.random.normal(ks[6], (2 * C, 1), jnp.float32) * 0.02
    return (wd, wconv, bconv, wcond, bcond, wout, bout)


if __name__ == "__main__":
    B, C, E, T = 2, 32, 16, 2000          # T deliberately NOT a multiple of 128
    dilation = 4

    key = jax.random.PRNGKey(0)
    kx, kc, kd, kp = jax.random.split(key, 4)
    x = jax.random.normal(kx, (B, C, T), jnp.float32)
    conditioner = jax.random.normal(kc, (B, E, T), jnp.float32)
    diffusion_step = jax.random.normal(kd, (B, C), jnp.float32)
    params = init_params(kp, E, C)

    # t_tile=1024 -> T padded to 2048, nt=2: exercises both the padded-tail
    # path and the cross-tile halo path while keeping a large lane-dense tile.
    res, skip = residual_block(x, conditioner, diffusion_step, params,
                               dilation=dilation, t_tile=1024)
    jax.block_until_ready((res, skip))

    res_ref, skip_ref = reference(x, conditioner, diffusion_step, params,
                                  dilation=dilation)
    # bf16 MXU operands (f32 accumulation) -> looser tolerance than pure f32.
    np.testing.assert_allclose(np.asarray(res), np.asarray(res_ref),
                               rtol=2e-2, atol=1e-1)
    np.testing.assert_allclose(np.asarray(skip), np.asarray(skip_ref),
                               rtol=2e-2, atol=1e-1)
    print("KERNEL_OK")
</pallas_src>

<mosaic_0001>
module attributes {stable_mosaic.version = 11 : i64} {
  func.func @_residual_block_kernel(%arg0: i32, %arg1: i32, %arg2: memref<1x32x1024xf32, #tpu.memory_space<vmem>>, %arg3: memref<1x16x1024xf32, #tpu.memory_space<vmem>>, %arg4: memref<1x1x32x128xf32, #tpu.memory_space<vmem>>, %arg5: memref<64x112xbf16, #tpu.memory_space<vmem>>, %arg6: memref<64x1xf32, #tpu.memory_space<vmem>>, %arg7: memref<64x32xbf16, #tpu.memory_space<vmem>>, %arg8: memref<64x1xf32, #tpu.memory_space<vmem>>, %arg9: memref<1x32x1024xf32, #tpu.memory_space<vmem>>, %arg10: memref<1x32x1024xf32, #tpu.memory_space<vmem>>, %arg11: memref<112x1024xbf16, #tpu.memory_space<vmem>>) attributes {dimension_semantics = [#tpu.dimension_semantics<parallel>, #tpu.dimension_semantics<parallel>], iteration_bounds = array<i64: 2, 2>, scalar_prefetch = 0 : i64, scratch_operands = 1 : i64, tpu.core_type = #tpu.core_type<tc>, window_params = [{transform_indices = @transform_0, window_bounds = array<i64: 1, 32, 1024>}, {transform_indices = @transform_1, window_bounds = array<i64: 1, 16, 1024>}, {transform_indices = @transform_2, window_bounds = array<i64: 1, 1, 32, 128>}, {pipeline_mode = #tpu.pipeline_mode<synchronous>, transform_indices = @transform_3, window_bounds = array<i64: 64, 112>}, {pipeline_mode = #tpu.pipeline_mode<synchronous>, transform_indices = @transform_4, window_bounds = array<i64: 64, 1>}, {pipeline_mode = #tpu.pipeline_mode<synchronous>, transform_indices = @transform_5, window_bounds = array<i64: 64, 32>}, {pipeline_mode = #tpu.pipeline_mode<synchronous>, transform_indices = @transform_6, window_bounds = array<i64: 64, 1>}, {transform_indices = @transform_7, window_bounds = array<i64: 1, 32, 1024>}, {transform_indices = @transform_8, window_bounds = array<i64: 1, 32, 1024>}]} {
    %c0 = arith.constant 0 : index
    %c0_0 = arith.constant 0 : index
    %c0_1 = arith.constant 0 : index
    %0 = vector.load %arg2[%c0, %c0_0, %c0_1] : memref<1x32x1024xf32, #tpu.memory_space<vmem>>, vector<1x32x1024xf32>
    %1 = vector.shape_cast %0 : vector<1x32x1024xf32> to vector<32x1024xf32>
    %c0_2 = arith.constant 0 : index
    %c0_3 = arith.constant 0 : index
    %c0_4 = arith.constant 0 : index
    %c0_5 = arith.constant 0 : index
    %2 = vector.load %arg4[%c0_2, %c0_3, %c0_4, %c0_5] : memref<1x1x32x128xf32, #tpu.memory_space<vmem>>, vector<1x1x32x128xf32>
    %3 = vector.shape_cast %2 : vector<1x1x32x128xf32> to vector<32x128xf32>
    %4 = vector.extract_strided_slice %3 {offsets = [0, 0], sizes = [32, 1], strides = [1, 1]} : vector<32x128xf32> to vector<32x1xf32>
    %5 = vector.extract_strided_slice %3 {offsets = [0, 1], sizes = [32, 4], strides = [1, 1]} : vector<32x128xf32> to vector<32x4xf32>
    %6 = vector.extract_strided_slice %3 {offsets = [0, 5], sizes = [32, 4], strides = [1, 1]} : vector<32x128xf32> to vector<32x4xf32>
    %7 = vector.broadcast %4 : vector<32x1xf32> to vector<32x1024xf32>
    %8 = arith.addf %1, %7 : vector<32x1024xf32>
    %c4_i32 = arith.constant 4 : i32
    %9 = tpu.dynamic_rotate %8 by %c4_i32 dim 1 : vector<32x1024xf32>, i32 -> vector<32x1024xf32>
    %10 = arith.truncf %9 : vector<32x1024xf32> to vector<32x1024xbf16>
    %c0_6 = arith.constant 0 : index
    %c0_7 = arith.constant 0 : index
    %11 = vector.load %arg11[%c0_6, %c0_7] : memref<112x1024xbf16, #tpu.memory_space<vmem>>, vector<32x1024xbf16>
    tpu.vector_store %arg11[%c0_6, %c0_7], %10 {strides = array<i32>} : memref<112x1024xbf16, #tpu.memory_space<vmem>>, vector<32x1024xbf16>,
    %12 = arith.truncf %5 : vector<32x4xf32> to vector<32x4xbf16>
    %c0_8 = arith.constant 0 : index
    %c0_9 = arith.constant 0 : index
    %13 = vector.load %arg11[%c0_8, %c0_9] : memref<112x1024xbf16, #tpu.memory_space<vmem>>, vector<32x4xbf16>
    tpu.vector_store %arg11[%c0_8, %c0_9], %12 {strides = array<i32>} : memref<112x1024xbf16, #tpu.memory_space<vmem>>, vector<32x4xbf16>,
    %14 = arith.truncf %8 : vector<32x1024xf32> to vector<32x1024xbf16>
    %c32 = arith.constant 32 : index
    %c0_10 = arith.constant 0 : index
    %15 = vector.load %arg11[%c32, %c0_10] : memref<112x1024xbf16, #tpu.memory_space<vmem>>, vector<32x1024xbf16>
    tpu.vector_store %arg11[%c32, %c0_10], %14 {strides = array<i32>} : memref<112x1024xbf16, #tpu.memory_space<vmem>>, vector<32x1024xbf16>,
    %c1020_i32 = arith.constant 1020 : i32
    %16 = tpu.dynamic_rotate %8 by %c1020_i32 dim 1 : vector<32x1024xf32>, i32 -> vector<32x1024xf32>
    %17 = arith.truncf %16 : vector<32x1024xf32> to vector<32x1024xbf16>
    %c64 = arith.constant 64 : index
    %c0_11 = arith.constant 0 : index
    %18 = vector.load %arg11[%c64, %c0_11] : memref<112x1024xbf16, #tpu.memory_space<vmem>>, vector<32x1024xbf16>
    tpu.vector_store %arg11[%c64, %c0_11], %17 {strides = array<i32>} : memref<112x1024xbf16, #tpu.memory_space<vmem>>, vector<32x1024xbf16>,
    %19 = arith.truncf %6 : vector<32x4xf32> to vector<32x4xbf16>
    %c64_12 = arith.constant 64 : index
    %c1020 = arith.constant 1020 : index
    %20 = vector.load %arg11[%c64_12, %c1020] : memref<112x1024xbf16, #tpu.memory_space<vmem>>, vector<32x4xbf16>
    tpu.vector_store %arg11[%c64_12, %c1020], %19 {strides = array<i32>} : memref<112x1024xbf16, #tpu.memory_space<vmem>>, vector<32x4xbf16>,
    %c0_13 = arith.constant 0 : index
    %c0_14 = arith.constant 0 : index
    %c0_15 = arith.constant 0 : index
    %21 = vector.load %arg3[%c0_13, %c0_14, %c0_15] : memref<1x16x1024xf32, #tpu.memory_space<vmem>>, vector<1x16x1024xf32>
    %22 = vector.shape_cast %21 : vector<1x16x1024xf32> to vector<16x1024xf32>
    %23 = arith.truncf %22 : vector<16x1024xf32> to vector<16x1024xbf16>
    %c96 = arith.constant 96 : index
    %c0_16 = arith.constant 0 : index
    %24 = vector.load %arg11[%c96, %c0_16] : memref<112x1024xbf16, #tpu.memory_space<vmem>>, vector<16x1024xbf16>
    tpu.vector_store %arg11[%c96, %c0_16], %23 {strides = array<i32>} : memref<112x1024xbf16, #tpu.memory_space<vmem>>, vector<16x1024xbf16>,
    %c0_17 = arith.constant 0 : index
    %c0_18 = arith.constant 0 : index
    %25 = vector.load %arg5[%c0_17, %c0_18] : memref<64x112xbf16, #tpu.memory_space<vmem>>, vector<64x112xbf16>
    %c0_19 = arith.constant 0 : index
    %c0_20 = arith.constant 0 : index
    %26 = vector.load %arg11[%c0_19, %c0_20] : memref<112x1024xbf16, #tpu.memory_space<vmem>>, vector<112x1024xbf16>
    %cst = arith.constant dense<0.000000e+00> : vector<64x1024xf32>
    %27 = tpu.matmul %25, %26, %cst {dimension_numbers = #tpu.dot_dimension_numbers<[1], [0], [0], [1], [0, 0, 1, 1], [], []>} : vector<64x112xbf16>, vector<112x1024xbf16>, vector<64x1024xf32> -> vector<64x1024xf32>
    %c0_21 = arith.constant 0 : index
    %c0_22 = arith.constant 0 : index
    %28 = vector.load %arg6[%c0_21, %c0_22] : memref<64x1xf32, #tpu.memory_space<vmem>>, vector<64x1xf32>
    %29 = vector.broadcast %28 : vector<64x1xf32> to vector<64x1024xf32>
    %30 = arith.addf %27, %29 : vector<64x1024xf32>
    %31 = vector.extract_strided_slice %30 {offsets = [0, 0], sizes = [32, 1024], strides = [1, 1]} : vector<64x1024xf32> to vector<32x1024xf32>
    %32 = vector.extract_strided_slice %30 {offsets = [32, 0], sizes = [32, 1024], strides = [1, 1]} : vector<64x1024xf32> to vector<32x1024xf32>
    %33 = arith.negf %31 : vector<32x1024xf32>
    %34 = math.exp %33 : vector<32x1024xf32>
    %cst_23 = arith.constant 1.000000e+00 : f32
    %35 = vector.broadcast %cst_23 : f32 to vector<32x1024xf32>
    %36 = arith.addf %35, %34 : vector<32x1024xf32>
    %37 = arith.divf %35, %36 : vector<32x1024xf32>
    %38 = math.tanh %32 : vector<32x1024xf32>
    %39 = arith.mulf %37, %38 : vector<32x1024xf32>
    %c0_24 = arith.constant 0 : index
    %c0_25 = arith.constant 0 : index
    %40 = vector.load %arg7[%c0_24, %c0_25] : memref<64x32xbf16, #tpu.memory_space<vmem>>, vector<64x32xbf16>
    %41 = arith.truncf %39 : vector<32x1024xf32> to vector<32x1024xbf16>
    %cst_26 = arith.constant dense<0.000000e+00> : vector<64x1024xf32>
    %42 = tpu.matmul %40, %41, %cst_26 {dimension_numbers = #tpu.dot_dimension_numbers<[1], [0], [0], [1], [0, 0, 1, 1], [], []>} : vector<64x32xbf16>, vector<32x1024xbf16>, vector<64x1024xf32> -> vector<64x1024xf32>
    %c0_27 = arith.constant 0 : index
    %c0_28 = arith.constant 0 : index
    %43 = vector.load %arg8[%c0_27, %c0_28] : memref<64x1xf32, #tpu.memory_space<vmem>>, vector<64x1xf32>
    %44 = vector.broadcast %43 : vector<64x1xf32> to vector<64x1024xf32>
    %45 = arith.addf %42, %44 : vector<64x1024xf32>
    %46 = vector.extract_strided_slice %45 {offsets = [0, 0], sizes = [32, 1024], strides = [1, 1]} : vector<64x1024xf32> to vector<32x1024xf32>
    %47 = arith.addf %1, %46 : vector<32x1024xf32>
    %cst_29 = arith.constant 0.707106769 : f32
    %48 = vector.broadcast %cst_29 : f32 to vector<32x1024xf32>
    %49 = arith.mulf %47, %48 : vector<32x1024xf32>
    %c0_30 = arith.constant 0 : index
    %c0_31 = arith.constant 0 : index
    %c0_32 = arith.constant 0 : index
    %50 = vector.load %arg9[%c0_30, %c0_31, %c0_32] : memref<1x32x1024xf32, #tpu.memory_space<vmem>>, vector<1x32x1024xf32>
    %51 = vector.shape_cast %50 : vector<1x32x1024xf32> to vector<32x1024xf32>
    %52 = vector.shape_cast %49 : vector<32x1024xf32> to vector<1x32x1024xf32>
    tpu.vector_store %arg9[%c0_30, %c0_31, %c0_32], %52 {strides = array<i32>} : memref<1x32x1024xf32, #tpu.memory_space<vmem>>, vector<1x32x1024xf32>,
    %53 = vector.extract_strided_slice %45 {offsets = [32, 0], sizes = [32, 1024], strides = [1, 1]} : vector<64x1024xf32> to vector<32x1024xf32>
    %c0_33 = arith.constant 0 : index
    %c0_34 = arith.constant 0 : index
    %c0_35 = arith.constant 0 : index
    %54 = vector.load %arg10[%c0_33, %c0_34, %c0_35] : memref<1x32x1024xf32, #tpu.memory_space<vmem>>, vector<1x32x1024xf32>
    %55 = vector.shape_cast %54 : vector<1x32x1024xf32> to vector<32x1024xf32>
    %56 = vector.shape_cast %53 : vector<32x1024xf32> to vector<1x32x1024xf32>
    tpu.vector_store %arg10[%c0_33, %c0_34, %c0_35], %56 {strides = array<i32>} : memref<1x32x1024xf32, #tpu.memory_space<vmem>>, vector<1x32x1024xf32>,
    return
  }
  func.func @transform_0(%arg0: i32, %arg1: i32) -> (i32, i32, i32) {
    %c0_i32 = arith.constant 0 : i32
    %c0_i32_0 = arith.constant 0 : i32
    return %arg0, %c0_i32, %arg1 : i32, i32, i32
  }
  func.func @transform_1(%arg0: i32, %arg1: i32) -> (i32, i32, i32) {
    %c0_i32 = arith.constant 0 : i32
    %c0_i32_0 = arith.constant 0 : i32
    return %arg0, %c0_i32, %arg1 : i32, i32, i32
  }
  func.func @transform_2(%arg0: i32, %arg1: i32) -> (i32, i32, i32, i32) {
    %c0_i32 = arith.constant 0 : i32
    %c0_i32_0 = arith.constant 0 : i32
    %c0_i32_1 = arith.constant 0 : i32
    return %arg0, %arg1, %c0_i32, %c0_i32_0 : i32, i32, i32, i32
  }
  func.func @transform_3(%arg0: i32, %arg1: i32) -> (i32, i32) {
    %c0_i32 = arith.constant 0 : i32
    %c0_i32_0 = arith.constant 0 : i32
    %c0_i32_1 = arith.constant 0 : i32
    return %c0_i32, %c0_i32_0 : i32, i32
  }
  func.func @transform_4(%arg0: i32, %arg1: i32) -> (i32, i32) {
    %c0_i32 = arith.constant 0 : i32
    %c0_i32_0 = arith.constant 0 : i32
    %c0_i32_1 = arith.constant 0 : i32
    return %c0_i32, %c0_i32_0 : i32, i32
  }
  func.func @transform_5(%arg0: i32, %arg1: i32) -> (i32, i32) {
    %c0_i32 = arith.constant 0 : i32
    %c0_i32_0 = arith.constant 0 : i32
    %c0_i32_1 = arith.constant 0 : i32
    return %c0_i32, %c0_i32_0 : i32, i32
  }
  func.func @transform_6(%arg0: i32, %arg1: i32) -> (i32, i32) {
    %c0_i32 = arith.constant 0 : i32
    %c0_i32_0 = arith.constant 0 : i32
    %c0_i32_1 = arith.constant 0 : i32
    return %c0_i32, %c0_i32_0 : i32, i32
  }
  func.func @transform_7(%arg0: i32, %arg1: i32) -> (i32, i32, i32) {
    %c0_i32 = arith.constant 0 : i32
    %c0_i32_0 = arith.constant 0 : i32
    return %arg0, %c0_i32, %arg1 : i32, i32, i32
  }
  func.func @transform_8(%arg0: i32, %arg1: i32) -> (i32, i32, i32) {
    %c0_i32 = arith.constant 0 : i32
    %c0_i32_0 = arith.constant 0 : i32
    return %arg0, %c0_i32, %arg1 : i32, i32, i32
  }
}

</mosaic_0001>

<llo_original>
// kernel: tpu_custom_call.1
$region0: #{tpu_custom_call.1}
  #allocation0 [shape = 'u32[]', space=smem, size = 0x4, offset = 0x4, fixed_abs, tag = 'smem constant byte address 0x4 - core index']
  #allocation1 [shape = 'u32[144,128]{1,0:T(1,128)}', space=vmem, size = 0x12000, scoped, tag = 'internal scratch']
  #allocation2 [shape = 'bf16[112,1024]{1,0:T(16,128)(2,1)}', space=vmem, size = 0x38000, scoped, tag = 'scratch operand']
  %s0 = inlined_call_operand.hbm [shape: f32[2,32,2048], index: 0, kind: input, shape index: {}]
  %s1 = inlined_call_operand.hbm [shape: f32[2,16,2048], index: 1, kind: input, shape index: {}]
  %s2 = inlined_call_operand.vmem [shape: f32[2,2,32,128], index: 2, kind: input, shape index: {}]
  %s3 = inlined_call_operand.vmem [shape: bf16[64,112], index: 3, kind: input, shape index: {}]
  %s4 = inlined_call_operand.vmem [shape: f32[64,1], index: 4, kind: input, shape index: {}]
  %s5 = inlined_call_operand.vmem [shape: bf16[64,32], index: 5, kind: input, shape index: {}]
  %s6 = inlined_call_operand.vmem [shape: f32[64,1], index: 6, kind: input, shape index: {}]
  %s7 = inlined_call_operand.hbm [shape: f32[2,32,2048], index: 7, kind: output, shape index: {0}]
  %s8 = inlined_call_operand.hbm [shape: f32[2,32,2048], index: 8, kind: output, shape index: {1}]
  %9 = xla_tuple %s7, %s8
  %s10 = sld [smem:[#allocation0]]
  $region77: #{tpu_custom_call.1} parent=0
    _
  %s12 = ssub.s32 1, %s10
  %s13 = scalar_select 0, %s12, %s10
  $region1: #{tpu_custom_call.1} parent=0
    #allocation3 [shape = 'u8[262144]{0}', space=vmem, size = 0x40000, scoped, tag = 'input window, operand 0']
    #allocation4 [shape = 's32[2]{0}', space=sflag, size = 0x8, scoped, tag = 'scoped memory for tpu_custom_call.1']
    #allocation5 [shape = 's32[2]{0}', space=sflag, size = 0x8, scoped, tag = 'scoped memory for tpu_custom_call.1']
    #allocation6 [shape = 'u8[131072]{0}', space=vmem, size = 0x20000, scoped, tag = 'input window, operand 1']
    #allocation7 [shape = 's32[2]{0}', space=sflag, size = 0x8, scoped, tag = 'scoped memory for tpu_custom_call.1']
    #allocation8 [shape = 'u8[262144]{0}', space=vmem, size = 0x40000, scoped, tag = 'output window, operand 0']
    #allocation9 [shape = 'u8[262144]{0}', space=vmem, size = 0x40000, scoped, tag = 'output window, operand 1']
    #allocation10 [shape = 's32[2]{0}', space=sflag, size = 0x8, scoped, tag = 'scoped memory for tpu_custom_call.1']
    %14 = vsyncpa [#allocation4], 0
    %s15 = scalar_lea.sflag [#allocation4], 1
    %16 = vsyncpa %s15, 0
    %17 = vsyncpa [#allocation7], 0
    %s18 = scalar_lea.sflag [#allocation7], 1
    %19 = vsyncpa %s18, 0
    %20 = vsyncpa [#allocation5], 0
    %s21 = scalar_lea.sflag [#allocation5], 1
    %22 = vsyncpa %s21, 0
    %23 = vsyncpa [#allocation10], 0
    %s24 = scalar_lea.sflag [#allocation10], 1
    %25 = vsyncpa %s24, 0
    loop: start=0, step=1, limit=6
    $region2: #{tpu_custom_call.1} parent=1 // loop_pre_header
      _
    $region3: #{tpu_custom_call.1} parent=1 // loop_header
      %s27 = sphi 0, %s31
      %p28 = scmp.ge.s32.totalorder %s27, 6
      %s34 = sphi 0, %s46
      %s35 = sphi 0, %s42
      %s36 = sphi 0, %s34
      %s37 = sphi 0, %s35
      %s38 = sphi 0, %s36
      %s39 = sphi 0, %s37
      %s51 = sphi 0, %s53
      %s54 = sphi 0, %s51
      %s55 = sphi 0, %s54
      %s71 = sphi 0, %s55
      %s79 = sphi 0, %s81
      %s82 = sphi 0, %s79
      %s83 = sphi 0, %s82
      %s99 = sphi 0, %s83
      %s107 = sphi 0, %s109
      %s110 = sphi 0, %s107
      %s111 = sphi 0, %s110
      %s127 = sphi 0, %s111
      %s131 = sphi 0, %s131
      %s133 = sphi 0, %s131
      %s134 = sphi 0, %s133
      %s148 = sphi 0, %s134
      %s152 = sphi 0, %s152
      %s154 = sphi 0, %s152
      %s155 = sphi 0, %s154
      %s169 = sphi 0, %s155
      %s173 = sphi 0, %s173
      %s175 = sphi 0, %s173
      %s176 = sphi 0, %s175
      %s190 = sphi 0, %s176
      %s194 = sphi 0, %s194
      %s196 = sphi 0, %s194
      %s197 = sphi 0, %s196
      %s211 = sphi 0, %s197
      %s219 = sphi 0, %s221
      %s222 = sphi 0, %s219
      %s223 = sphi 0, %s222
      %s239 = sphi 0, %s223
      %s247 = sphi 0, %s249
      %s250 = sphi 0, %s247
      %s251 = sphi 0, %s250
      %s267 = sphi 0, %s251
    $region4: #{tpu_custom_call.1} parent=1 // loop_header_branch
      %30 = sbr.rel (%p28) target = $region8
    $region5: #{tpu_custom_call.1} parent=1 // loop_body
      %s32 = ssub.s32 %s27, 1
      %s33 = ssub.s32 %s27, 2
      %s40 = sadd.s32 1, %s35
      %p41 = scmp.ge.s32.totalorder %s40, 2
      %s42 = scalar_select %p41, 0, %s40
      %s43 = sadd.s32 1, %s34
      %s44 = scalar_select %p41, %s43, %s34
      %p45 = scmp.ge.s32.totalorder %s44, 2
      %s46 = scalar_select %p45, 0, %s44
      %s47 = ssub.s32 %s34, %s46
      %s48 = ssub.s32 %s35, %s42
      %s49 = sor.u32 %s47, %s48
      %p50 = scmp.eq.s32.totalorder %s49, 0
      %s52 = sadd.s32 %s51, 1
      %s53 = scalar_select %p50, %s51, %s52
      %p56 = pneg %p50
      %p57 = scmp.eq.s32.totalorder %s27, 3
      %p58 = por %p56, %p57
      %p59 = scmp.ne.s32.totalorder %s51, %s54
      %p60 = scmp.eq.s32.totalorder %s27, 0
      %p61 = por %p59, %p60
      %p62 = scmp.ne.s32.totalorder %s51, %s54
      %p63 = scmp.eq.s32.totalorder %s32, 3
      %p64 = por %p62, %p63
      %p65 = scmp.ne.s32.totalorder %s54, %s55
      %p66 = scmp.eq.s32.totalorder %s32, 0
      %p67 = por %p65, %p66
      %p68 = scmp.ne.s32.totalorder %s54, %s55
      %p69 = scmp.eq.s32.totalorder %s33, 3
      %p70 = por %p68, %p69
      %p72 = scmp.ne.s32.totalorder %s55, %s71
      %p73 = scmp.eq.s32.totalorder %s33, 0
      %p74 = por %p72, %p73
      %s75 = ssub.s32 %s34, %s46
      %s76 = ssub.s32 %s35, %s42
      %s77 = sor.u32 %s75, %s76
      %p78 = scmp.eq.s32.totalorder %s77, 0
      %s80 = sadd.s32 %s79, 1
      %s81 = scalar_select %p78, %s79, %s80
      %p84 = pneg %p78
      %p85 = scmp.eq.s32.totalorder %s27, 3
      %p86 = por %p84, %p85
      %p87 = scmp.ne.s32.totalorder %s79, %s82
      %p88 = scmp.eq.s32.totalorder %s27, 0
      %p89 = por %p87, %p88
      %p90 = scmp.ne.s32.totalorder %s79, %s82
      %p91 = scmp.eq.s32.totalorder %s32, 3
      %p92 = por %p90, %p91
      %p93 = scmp.ne.s32.totalorder %s82, %s83
      %p94 = scmp.eq.s32.totalorder %s32, 0
      %p95 = por %p93, %p94
      %p96 = scmp.ne.s32.totalorder %s82, %s83
      %p97 = scmp.eq.s32.totalorder %s33, 3
      %p98 = por %p96, %p97
      %p100 = scmp.ne.s32.totalorder %s83, %s99
      %p101 = scmp.eq.s32.totalorder %s33, 0
      %p102 = por %p100, %p101
      %s103 = ssub.s32 %s34, %s46
      %s104 = ssub.s32 %s35, %s42
      %s105 = sor.u32 %s103, %s104
      %p106 = scmp.eq.s32.totalorder %s105, 0
      %s108 = sadd.s32 %s107, 1
      %s109 = scalar_select %p106, %s107, %s108
      %p112 = pneg %p106
      %p113 = scmp.eq.s32.totalorder %s27, 3
      %p114 = por %p112, %p113
      %p115 = scmp.ne.s32.totalorder %s107, %s110
      %p116 = scmp.eq.s32.totalorder %s27, 0
      %p117 = por %p115, %p116
      %p118 = scmp.ne.s32.totalorder %s107, %s110
      %p119 = scmp.eq.s32.totalorder %s32, 3
      %p120 = por %p118, %p119
      %p121 = scmp.ne.s32.totalorder %s110, %s111
      %p122 = scmp.eq.s32.totalorder %s32, 0
      %p123 = por %p121, %p122
      %p124 = scmp.ne.s32.totalorder %s110, %s111
      %p125 = scmp.eq.s32.totalorder %s33, 3
      %p126 = por %p124, %p125
      %p128 = scmp.ne.s32.totalorder %s111, %s127
      %p129 = scmp.eq.s32.totalorder %s33, 0
      %p130 = por %p128, %p129
      %s132 = sadd.s32 %s131, 1
      %p135 = scmp.eq.s32.totalorder %s27, 3
      %p136 = scmp.ne.s32.totalorder %s131, %s133
      %p137 = scmp.eq.s32.totalorder %s27, 0
      %p138 = por %p136, %p137
      %p139 = scmp.ne.s32.totalorder %s131, %s133
      %p140 = scmp.eq.s32.totalorder %s32, 3
      %p141 = por %p139, %p140
      %p142 = scmp.ne.s32.totalorder %s133, %s134
      %p143 = scmp.eq.s32.totalorder %s32, 0
      %p144 = por %p142, %p143
      %p145 = scmp.ne.s32.totalorder %s133, %s134
      %p146 = scmp.eq.s32.totalorder %s33, 3
      %p147 = por %p145, %p146
      %p149 = scmp.ne.s32.totalorder %s134, %s148
      %p150 = scmp.eq.s32.totalorder %s33, 0
      %p151 = por %p149, %p150
      %s153 = sadd.s32 %s152, 1
      %p156 = scmp.eq.s32.totalorder %s27, 3
      %p157 = scmp.ne.s32.totalorder %s152, %s154
      %p158 = scmp.eq.s32.totalorder %s27, 0
      %p159 = por %p157, %p158
      %p160 = scmp.ne.s32.totalorder %s152, %s154
      %p161 = scmp.eq.s32.totalorder %s32, 3
      %p162 = por %p160, %p161
      %p163 = scmp.ne.s32.totalorder %s154, %s155
      %p164 = scmp.eq.s32.totalorder %s32, 0
      %p165 = por %p163, %p164
      %p166 = scmp.ne.s32.totalorder %s154, %s155
      %p167 = scmp.eq.s32.totalorder %s33, 3
      %p168 = por %p166, %p167
      %p170 = scmp.ne.s32.totalorder %s155, %s169
      %p171 = scmp.eq.s32.totalorder %s33, 0
      %p172 = por %p170, %p171
      %s174 = sadd.s32 %s173, 1
      %p177 = scmp.eq.s32.totalorder %s27, 3
      %p178 = scmp.ne.s32.totalorder %s173, %s175
      %p179 = scmp.eq.s32.totalorder %s27, 0
      %p180 = por %p178, %p179
      %p181 = scmp.ne.s32.totalorder %s173, %s175
      %p182 = scmp.eq.s32.totalorder %s32, 3
      %p183 = por %p181, %p182
      %p184 = scmp.ne.s32.totalorder %s175, %s176
      %p185 = scmp.eq.s32.totalorder %s32, 0
      %p186 = por %p184, %p185
      %p187 = scmp.ne.s32.totalorder %s175, %s176
      %p188 = scmp.eq.s32.totalorder %s33, 3
      %p189 = por %p187, %p188
      %p191 = scmp.ne.s32.totalorder %s176, %s190
      %p192 = scmp.eq.s32.totalorder %s33, 0
      %p193 = por %p191, %p192
      %s195 = sadd.s32 %s194, 1
      %p198 = scmp.eq.s32.totalorder %s27, 3
      %p199 = scmp.ne.s32.totalorder %s194, %s196
      %p200 = scmp.eq.s32.totalorder %s27, 0
      %p201 = por %p199, %p200
      %p202 = scmp.ne.s32.totalorder %s194, %s196
      %p203 = scmp.eq.s32.totalorder %s32, 3
      %p204 = por %p202, %p203
      %p205 = scmp.ne.s32.totalorder %s196, %s197
      %p206 = scmp.eq.s32.totalorder %s32, 0
      %p207 = por %p205, %p206
      %p208 = scmp.ne.s32.totalorder %s196, %s197
      %p209 = scmp.eq.s32.totalorder %s33, 3
      %p210 = por %p208, %p209
      %p212 = scmp.ne.s32.totalorder %s197, %s211
      %p213 = scmp.eq.s32.totalorder %s33, 0
      %p214 = por %p212, %p213
      %s215 = ssub.s32 %s34, %s46
      %s216 = ssub.s32 %s35, %s42
      %s217 = sor.u32 %s215, %s216
      %p218 = scmp.eq.s32.totalorder %s217, 0
      %s220 = sadd.s32 %s219, 1
      %s221 = scalar_select %p218, %s219, %s220
      %p224 = pneg %p218
      %p225 = scmp.eq.s32.totalorder %s27, 3
      %p226 = por %p224, %p225
      %p227 = scmp.ne.s32.totalorder %s219, %s222
      %p228 = scmp.eq.s32.totalorder %s27, 0
      %p229 = por %p227, %p228
      %p230 = scmp.ne.s32.totalorder %s219, %s222
      %p231 = scmp.eq.s32.totalorder %s32, 3
      %p232 = por %p230, %p231
      %p233 = scmp.ne.s32.totalorder %s222, %s223
      %p234 = scmp.eq.s32.totalorder %s32, 0
      %p235 = por %p233, %p234
      %p236 = scmp.ne.s32.totalorder %s222, %s223
      %p237 = scmp.eq.s32.totalorder %s33, 3
      %p238 = por %p236, %p237
      %p240 = scmp.ne.s32.totalorder %s223, %s239
      %p241 = scmp.eq.s32.totalorder %s33, 0
      %p242 = por %p240, %p241
      %s243 = ssub.s32 %s34, %s46
      %s244 = ssub.s32 %s35, %s42
      %s245 = sor.u32 %s243, %s244
      %p246 = scmp.eq.s32.totalorder %s245, 0
      %s248 = sadd.s32 %s247, 1
      %s249 = scalar_select %p246, %s247, %s248
      %p252 = pneg %p246
      %p253 = scmp.eq.s32.totalorder %s27, 3
      %p254 = por %p252, %p253
      %p255 = scmp.ne.s32.totalorder %s247, %s250
      %p256 = scmp.eq.s32.totalorder %s27, 0
      %p257 = por %p255, %p256
      %p258 = scmp.ne.s32.totalorder %s247, %s250
      %p259 = scmp.eq.s32.totalorder %s32, 3
      %p260 = por %p258, %p259
      %p261 = scmp.ne.s32.totalorder %s250, %s251
      %p262 = scmp.eq.s32.totalorder %s32, 0
      %p263 = por %p261, %p262
      %p264 = scmp.ne.s32.totalorder %s250, %s251
      %p265 = scmp.eq.s32.totalorder %s33, 3
      %p266 = por %p264, %p265
      %p268 = scmp.ne.s32.totalorder %s251, %s267
      %p269 = scmp.eq.s32.totalorder %s33, 0
      %p270 = por %p268, %p269
      %p271 = scmp.le.s32.totalorder 1, %s27
      %p272 = scmp.lt.s32.totalorder %s27, 5
      %p273 = pnand %p271, %p272
      %p274 = pneg %p273
      // Predicated region
      $region9: #{tpu_custom_call.1} parent=5 // pred_check
        _
      $region10: #{tpu_custom_call.1} parent=5 // pred_check_branch
        %276 = sbr.rel (%p273) target = $region12
      $region11: #{tpu_custom_call.1} parent=5 // pred_region
        %s277 = ssub.s32 %s27, 1
        // Predicated region
        $region13: #{tpu_custom_call.1} parent=11 // pred_check
          %p278 = pneg %p144
        $region14: #{tpu_custom_call.1} parent=11 // pred_check_branch
          %280 = sbr.rel (%p278) target = $region16
        $region15: #{tpu_custom_call.1} parent=11 // pred_region
          _
        $region16: #{tpu_custom_call.1} parent=11 // pred_fallthru
          _
        // Predicated region
        $region17: #{tpu_custom_call.1} parent=11 // pred_check
          %p281 = pneg %p165
        $region18: #{tpu_custom_call.1} parent=11 // pred_check_branch
          %283 = sbr.rel (%p281) target = $region20
        $region19: #{tpu_custom_call.1} parent=11 // pred_region
          _
        $region20: #{tpu_custom_call.1} parent=11 // pred_fallthru
          _
        // Predicated region
        $region21: #{tpu_custom_call.1} parent=11 // pred_check
          %p284 = pneg %p186
        $region22: #{tpu_custom_call.1} parent=11 // pred_check_branch
          %286 = sbr.rel (%p284) target = $region24
        $region23: #{tpu_custom_call.1} parent=11 // pred_region
          _
        $region24: #{tpu_custom_call.1} parent=11 // pred_fallthru
          _
        // Predicated region
        $region25: #{tpu_custom_call.1} parent=11 // pred_check
          %p287 = pneg %p207
        $region26: #{tpu_custom_call.1} parent=11 // pred_check_branch
          %289 = sbr.rel (%p287) target = $region28
        $region27: #{tpu_custom_call.1} parent=11 // pred_region
          _
        $region28: #{tpu_custom_call.1} parent=11 // pred_fallthru
          _
      $region12: #{tpu_custom_call.1} parent=5 // pred_fallthru
        _
      %p290 = scmp.lt.s32.totalorder %s27, 4
      // Predicated region
      $region29: #{tpu_custom_call.1} parent=5 // pred_check
        %p291 = pneg %p290
      $region30: #{tpu_custom_call.1} parent=5 // pred_check_branch
        %293 = sbr.rel (%p291) target = $region32
      $region31: #{tpu_custom_call.1} parent=5 // pred_region
        // Predicated region
        $region33: #{tpu_custom_call.1} parent=31 // pred_check
          %p294 = pneg %p61
        $region34: #{tpu_custom_call.1} parent=31 // pred_check_branch
          %296 = sbr.rel (%p294) target = $region36
        $region35: #{tpu_custom_call.1} parent=31 // pred_region
          %s297 = sand.u32 %s51, 1
          %s298 = scalar_lea.sflag [#allocation4], %s297
          %s299 = sand.u32 %s51, 1
          %s300 = smul.addr %s299, 256
          %s301 = scalar_lea.vmem [#allocation3], %s300
          %s302 = smul.u32 8, %s35
          %s304 = ssub.s32 4096, 4096
          %305 = vsyncadd %s298, %s304
          %s306 = smul.addr %s34, 64
          %s307 = sadd.s32 %s302, %s306
          %s308 = smul.addr %s307, 128
          %s309 = scalar_lea.hbm %s0, %s308
          %s310 = sshll.u32 %s301, 4
          %s311 = int_to_ptr.vmem [resolvable:$true] %s310
          %316 = dma.hbm_to_vmem [thread:$0]  %s309, 4096, %s311, %s298, 2048, 1024, 64
        $region36: #{tpu_custom_call.1} parent=31 // pred_fallthru
          _
        // Predicated region
        $region37: #{tpu_custom_call.1} parent=31 // pred_check
          %p317 = pneg %p89
        $region38: #{tpu_custom_call.1} parent=31 // pred_check_branch
          %319 = sbr.rel (%p317) target = $region40
        $region39: #{tpu_custom_call.1} parent=31 // pred_region
          %s320 = sand.u32 %s79, 1
          %s321 = scalar_lea.sflag [#allocation7], %s320
          %s322 = sand.u32 %s79, 1
          %s323 = smul.addr %s322, 128
          %s324 = scalar_lea.vmem [#allocation6], %s323
          %s325 = smul.u32 8, %s35
          %s327 = ssub.s32 2048, 2048
          %328 = vsyncadd %s321, %s327
          %s329 = smul.addr %s34, 32
          %s330 = sadd.s32 %s325, %s329
          %s331 = smul.addr %s330, 128
          %s332 = scalar_lea.hbm %s1, %s331
          %s333 = sshll.u32 %s324, 4
          %s334 = int_to_ptr.vmem [resolvable:$true] %s333
          %339 = dma.hbm_to_vmem [thread:$0]  %s332, 2048, %s334, %s321, 2048, 1024, 64
        $region40: #{tpu_custom_call.1} parent=31 // pred_fallthru
          _
        // Predicated region
        $region41: #{tpu_custom_call.1} parent=31 // pred_check
          %p340 = pneg %p117
        $region42: #{tpu_custom_call.1} parent=31 // pred_check_branch
          %342 = sbr.rel (%p340) target = $region44
        $region43: #{tpu_custom_call.1} parent=31 // pred_region
          %p343 = scmp.lt.s32.totalorder %s34, 1
          %s344 = scalar_select %p343, %s34, 1
          %p345 = scmp.lt.s32.totalorder %s35, 1
          %s346 = scalar_select %p345, %s35, 1
          %s347 = smul.addr %s346, 4
          %s348 = smul.addr %s344, 8
          %s349 = sadd.s32 %s347, %s348
          %s350 = smul.addr %s349, 8
          %s351 = scalar_lea.vmem %s2, %s350
        $region44: #{tpu_custom_call.1} parent=31 // pred_fallthru
          _
      $region32: #{tpu_custom_call.1} parent=5 // pred_fallthru
        _
      %p352 = scmp.le.s32.totalorder 1, %s27
      %p353 = scmp.lt.s32.totalorder %s27, 5
      %p354 = pnand %p352, %p353
      %p355 = pneg %p354
      // Predicated region
      $region45: #{tpu_custom_call.1} parent=5 // pred_check
        _
      $region46: #{tpu_custom_call.1} parent=5 // pred_check_branch
        %357 = sbr.rel (%p354) target = $region48
      $region47: #{tpu_custom_call.1} parent=5 // pred_region
        %s358 = ssub.s32 %s27, 1
        %s359 = sand.u32 %s54, 1
        %s360 = scalar_lea.sflag [#allocation4], %s359
        %s361 = sand.u32 %s54, 1
        %s362 = smul.addr %s361, 256
        %s363 = scalar_lea.vmem [#allocation3], %s362
        // Predicated region
        $region49: #{tpu_custom_call.1} parent=47 // pred_check
          %p364 = pneg %p67
        $region50: #{tpu_custom_call.1} parent=47 // pred_check_branch
          %366 = sbr.rel (%p364) target = $region52
        $region51: #{tpu_custom_call.1} parent=47 // pred_region
          %367 = dma.done %s360, 4096
        $region52: #{tpu_custom_call.1} parent=47 // pred_fallthru
          _
        %s368 = sand.u32 %s82, 1
        %s369 = scalar_lea.sflag [#allocation7], %s368
        %s370 = sand.u32 %s82, 1
        %s371 = smul.addr %s370, 128
        %s372 = scalar_lea.vmem [#allocation6], %s371
        // Predicated region
        $region53: #{tpu_custom_call.1} parent=47 // pred_check
          %p373 = pneg %p95
        $region54: #{tpu_custom_call.1} parent=47 // pred_check_branch
          %375 = sbr.rel (%p373) target = $region56
        $region55: #{tpu_custom_call.1} parent=47 // pred_region
          %376 = dma.done %s369, 2048
        $region56: #{tpu_custom_call.1} parent=47 // pred_fallthru
          _
        %s377 = sand.u32 %s54, 1
        %s378 = scalar_lea.sflag [#allocation4], %s377
        %s379 = sand.u32 %s54, 1
        %s380 = smul.addr %s379, 256
        %s381 = scalar_lea.vmem [#allocation3], %s380
        %p382 = pneg %p67
        %p383 = pneg %p64
        %s384 = sand.u32 %s82, 1
        %s385 = scalar_lea.sflag [#allocation7], %s384
        %s386 = sand.u32 %s82, 1
        %s387 = smul.addr %s386, 128
        %s388 = scalar_lea.vmem [#allocation6], %s387
        %p389 = pneg %p95
        %p390 = pneg %p92
        %p391 = scmp.lt.s32.totalorder %s36, 1
        %s392 = scalar_select %p391, %s36, 1
        %p393 = scmp.lt.s32.totalorder %s37, 1
        %s394 = scalar_select %p393, %s37, 1
        %s395 = smul.addr %s394, 4
        %s396 = smul.addr %s392, 8
        %s397 = sadd.s32 %s395, %s396
        %s398 = smul.addr %s397, 8
        %s399 = scalar_lea.vmem %s2, %s398
        %p400 = pneg %p123
        %p401 = pneg %p120
        %p402 = pneg %p144
        %p403 = pneg %p141
        %p404 = pneg %p165
        %p405 = pneg %p162
        %p406 = pneg %p186
        %p407 = pneg %p183
        %p408 = pneg %p207
        %p409 = pneg %p204
        %p410 = pneg %p235
        %p411 = pneg %p232
        %s412 = sand.u32 %s222, 1
        %s413 = scalar_lea.sflag [#allocation5], %s412
        %s414 = sand.u32 %s222, 1
        %s415 = smul.addr %s414, 256
        %s416 = scalar_lea.vmem [#allocation8], %s415
        %p417 = pneg %p263
        %p418 = pneg %p260
        %s419 = sand.u32 %s250, 1
        %s420 = scalar_lea.sflag [#allocation10], %s419
        %s421 = sand.u32 %s250, 1
        %s422 = smul.addr %s421, 256
        %s423 = scalar_lea.vmem [#allocation9], %s422
        %s424 = smul.u32 8, %s37
        %s425 = smul.u32 8, %s37
        %p426 = scmp.lt.s32.totalorder %s36, 1
        %s427 = scalar_select %p426, %s36, 1
        %p428 = scmp.lt.s32.totalorder %s37, 1
        %s429 = scalar_select %p428, %s37, 1
        %s430 = smul.addr %s429, 4
        %s431 = smul.addr %s427, 8
        %s432 = sadd.s32 %s430, %s431
        %s433 = smul.addr %s432, 8
        %s434 = scalar_lea.vmem %s2, %s433
        %s435 = smul.u32 8, %s37
        %s436 = smul.u32 8, %s37
        %v438 = vld [vmem:[%s363] sm:$0xff]
        %v439 = vld [vmem:[%s363 + $0x8] sm:$0xff]
        %v440 = vld [vmem:[%s363 + $0x10] sm:$0xff]
        %v441 = vld [vmem:[%s363 + $0x18] sm:$0xff]
        %v442 = vld [vmem:[%s363 + $0x20] sm:$0xff]
        %v443 = vld [vmem:[%s363 + $0x28] sm:$0xff]
        %v444 = vld [vmem:[%s363 + $0x30] sm:$0xff]
        %v445 = vld [vmem:[%s363 + $0x38] sm:$0xff]
        %v446 = vld [vmem:[%s363 + $0x40] sm:$0xff]
        %v447 = vld [vmem:[%s363 + $0x48] sm:$0xff]
        %v448 = vld [vmem:[%s363 + $0x50] sm:$0xff]
        %v449 = vld [vmem:[%s363 + $0x58] sm:$0xff]
        %v450 = vld [vmem:[%s363 + $0x60] sm:$0xff]
        %v451 = vld [vmem:[%s363 + $0x68] sm:$0xff]
        %v452 = vld [vmem:[%s363 + $0x70] sm:$0xff]
        %v453 = vld [vmem:[%s363 + $0x78] sm:$0xff]
        %v454 = vld [vmem:[%s363 + $0x80] sm:$0xff]
        %v455 = vld [vmem:[%s363 + $0x88] sm:$0xff]
        %v456 = vld [vmem:[%s363 + $0x90] sm:$0xff]
        %v457 = vld [vmem:[%s363 + $0x98] sm:$0xff]
        %v458 = vld [vmem:[%s363 + $0xa0] sm:$0xff]
        %v459 = vld [vmem:[%s363 + $0xa8] sm:$0xff]
        %v460 = vld [vmem:[%s363 + $0xb0] sm:$0xff]
        %v461 = vld [vmem:[%s363 + $0xb8] sm:$0xff]
        %v462 = vld [vmem:[%s363 + $0xc0] sm:$0xff]
        %v463 = vld [vmem:[%s363 + $0xc8] sm:$0xff]
        %v464 = vld [vmem:[%s363 + $0xd0] sm:$0xff]
        %v465 = vld [vmem:[%s363 + $0xd8] sm:$0xff]
        %v466 = vld [vmem:[%s363 + $0xe0] sm:$0xff]
        %v467 = vld [vmem:[%s363 + $0xe8] sm:$0xff]
        %v468 = vld [vmem:[%s363 + $0xf0] sm:$0xff]
        %v469 = vld [vmem:[%s363 + $0xf8] sm:$0xff]
        %v470 = vld [vmem:[%s434] sm:$0xff]
        %v471 = vld [vmem:[%s434 + $0x8] sm:$0xff]
        %v472 = vld [vmem:[%s434 + $0x10] sm:$0xff]
        %v473 = vld [vmem:[%s434 + $0x18] sm:$0xff]
        %475 = vset.pattern.permute.xlu0 0
        %476 = vperm.xlu0 %475, %v470
        %v477 = vpop.permute.xlu0 %476
        %480 = vset.pattern.permute.xlu0 0
        %481 = vperm.xlu0 %480, %v471
        %v482 = vpop.permute.xlu0 %481
        %485 = vset.pattern.permute.xlu0 0
        %486 = vperm.xlu0 %485, %v472
        %v487 = vpop.permute.xlu0 %486
        %490 = vset.pattern.permute.xlu0 0
        %491 = vperm.xlu0 %490, %v473
        %v492 = vpop.permute.xlu0 %491
        %v494 = vadd.f32 %v438, %v477
        %v495 = vadd.f32 %v439, %v477
        %v496 = vadd.f32 %v440, %v477
        %v497 = vadd.f32 %v441, %v477
        %v498 = vadd.f32 %v442, %v477
        %v499 = vadd.f32 %v443, %v477
        %v500 = vadd.f32 %v444, %v477
        %v501 = vadd.f32 %v445, %v477
        %v502 = vadd.f32 %v446, %v482
        %v503 = vadd.f32 %v447, %v482
        %v504 = vadd.f32 %v448, %v482
        %v505 = vadd.f32 %v449, %v482
        %v506 = vadd.f32 %v450, %v482
        %v507 = vadd.f32 %v451, %v482
        %v508 = vadd.f32 %v452, %v482
        %v509 = vadd.f32 %v453, %v482
        %v510 = vadd.f32 %v454, %v487
        %v511 = vadd.f32 %v455, %v487
        %v512 = vadd.f32 %v456, %v487
        %v513 = vadd.f32 %v457, %v487
        %v514 = vadd.f32 %v458, %v487
        %v515 = vadd.f32 %v459, %v487
        %v516 = vadd.f32 %v460, %v487
        %v517 = vadd.f32 %v461, %v487
        %v518 = vadd.f32 %v462, %v492
        %v519 = vadd.f32 %v463, %v492
        %v520 = vadd.f32 %v464, %v492
        %v521 = vadd.f32 %v465, %v492
        %v522 = vadd.f32 %v466, %v492
        %v523 = vadd.f32 %v467, %v492
        %v524 = vadd.f32 %v468, %v492
        %v525 = vadd.f32 %v469, %v492
        %526 = vrot.lane.b32.xlu0 %v494, 4
        %v527 = vpop.permute.xlu0 %526
        %528 = vrot.lane.b32.xlu0 %v502, 4
        %v529 = vpop.permute.xlu0 %528
        %530 = vrot.lane.b32.xlu0 %v510, 4
        %v531 = vpop.permute.xlu0 %530
        %532 = vrot.lane.b32.xlu0 %v518, 4
        %v533 = vpop.permute.xlu0 %532
        %534 = vrot.lane.b32.xlu0 %v495, 4
        %v535 = vpop.permute.xlu0 %534
        %536 = vrot.lane.b32.xlu0 %v503, 4
        %v537 = vpop.permute.xlu0 %536
        %538 = vrot.lane.b32.xlu0 %v511, 4
        %v539 = vpop.permute.xlu0 %538
        %540 = vrot.lane.b32.xlu0 %v519, 4
        %v541 = vpop.permute.xlu0 %540
        %542 = vrot.lane.b32.xlu0 %v496, 4
        %v543 = vpop.permute.xlu0 %542
        %544 = vrot.lane.b32.xlu0 %v504, 4
        %v545 = vpop.permute.xlu0 %544
        %546 = vrot.lane.b32.xlu0 %v512, 4
        %v547 = vpop.permute.xlu0 %546
        %548 = vrot.lane.b32.xlu0 %v520, 4
        %v549 = vpop.permute.xlu0 %548
        %550 = vrot.lane.b32.xlu0 %v497, 4
        %v551 = vpop.permute.xlu0 %550
        %552 = vrot.lane.b32.xlu0 %v505, 4
        %v553 = vpop.permute.xlu0 %552
        %554 = vrot.lane.b32.xlu0 %v513, 4
        %v555 = vpop.permute.xlu0 %554
        %556 = vrot.lane.b32.xlu0 %v521, 4
        %v557 = vpop.permute.xlu0 %556
        %558 = vrot.lane.b32.xlu0 %v498, 4
        %v559 = vpop.permute.xlu0 %558
        %560 = vrot.lane.b32.xlu0 %v506, 4
        %v561 = vpop.permute.xlu0 %560
        %562 = vrot.lane.b32.xlu0 %v514, 4
        %v563 = vpop.permute.xlu0 %562
        %564 = vrot.lane.b32.xlu0 %v522, 4
        %v565 = vpop.permute.xlu0 %564
        %566 = vrot.lane.b32.xlu0 %v499, 4
        %v567 = vpop.permute.xlu0 %566
        %568 = vrot.lane.b32.xlu0 %v507, 4
        %v569 = vpop.permute.xlu0 %568
        %570 = vrot.lane.b32.xlu0 %v515, 4
        %v571 = vpop.permute.xlu0 %570
        %572 = vrot.lane.b32.xlu0 %v523, 4
        %v573 = vpop.permute.xlu0 %572
        %574 = vrot.lane.b32.xlu0 %v500, 4
        %v575 = vpop.permute.xlu0 %574
        %576 = vrot.lane.b32.xlu0 %v508, 4
        %v577 = vpop.permute.xlu0 %576
        %578 = vrot.lane.b32.xlu0 %v516, 4
        %v579 = vpop.permute.xlu0 %578
        %580 = vrot.lane.b32.xlu0 %v524, 4
        %v581 = vpop.permute.xlu0 %580
        %582 = vrot.lane.b32.xlu0 %v501, 4
        %v583 = vpop.permute.xlu0 %582
        %584 = vrot.lane.b32.xlu0 %v509, 4
        %v585 = vpop.permute.xlu0 %584
        %586 = vrot.lane.b32.xlu0 %v517, 4
        %v587 = vpop.permute.xlu0 %586
        %588 = vrot.lane.b32.xlu0 %v525, 4
        %v589 = vpop.permute.xlu0 %588
        %v590 = vlaneseq
        %v591 = vand.u32 %v590, 127
        %vm592 = vcmp.lt.s32.totalorder %v591, 4
        %v593 = vsel %vm592, %v575, %v583
        %v594 = vsel %vm592, %v577, %v585
        %v595 = vsel %vm592, %v579, %v587
        %v596 = vsel %vm592, %v581, %v589
        %v597 = vsel %vm592, %v567, %v575
        %v598 = vsel %vm592, %v569, %v577
        %v599 = vsel %vm592, %v571, %v579
        %v600 = vsel %vm592, %v573, %v581
        %v601 = vsel %vm592, %v559, %v567
        %v602 = vsel %vm592, %v561, %v569
        %v603 = vsel %vm592, %v563, %v571
        %v604 = vsel %vm592, %v565, %v573
        %v605 = vsel %vm592, %v551, %v559
        %v606 = vsel %vm592, %v553, %v561
        %v607 = vsel %vm592, %v555, %v563
        %v608 = vsel %vm592, %v557, %v565
        %v609 = vsel %vm592, %v543, %v551
        %v610 = vsel %vm592, %v545, %v553
        %v611 = vsel %vm592, %v547, %v555
        %v612 = vsel %vm592, %v549, %v557
        %v613 = vsel %vm592, %v535, %v543
        %v614 = vsel %vm592, %v537, %v545
        %v615 = vsel %vm592, %v539, %v547
        %v616 = vsel %vm592, %v541, %v549
        %v617 = vsel %vm592, %v527, %v535
        %v618 = vsel %vm592, %v529, %v537
        %v619 = vsel %vm592, %v531, %v539
        %v620 = vsel %vm592, %v533, %v541
        %v621 = vsel %vm592, %v583, %v527
        %v622 = vsel %vm592, %v585, %v529
        %v623 = vsel %vm592, %v587, %v531
        %v624 = vsel %vm592, %v589, %v533
        %v625 = vpack.c.bf16 %v622, %v621
        %v626 = vpack.c.bf16 %v618, %v617
        %v627 = vpack.c.bf16 %v614, %v613
        %v628 = vpack.c.bf16 %v610, %v609
        %v629 = vpack.c.bf16 %v606, %v605
        %v630 = vpack.c.bf16 %v602, %v601
        %v631 = vpack.c.bf16 %v598, %v597
        %v632 = vpack.c.bf16 %v594, %v593
        %v633 = vpack.c.bf16 %v624, %v623
        %v634 = vpack.c.bf16 %v620, %v619
        %v635 = vpack.c.bf16 %v616, %v615
        %v636 = vpack.c.bf16 %v612, %v611
        %v637 = vpack.c.bf16 %v608, %v607
        %v638 = vpack.c.bf16 %v604, %v603
        %v639 = vpack.c.bf16 %v600, %v599
        %v640 = vpack.c.bf16 %v596, %v595
        %641 = vst [vmem:[#allocation2] sm:$0xff] %v625
        %642 = vst [vmem:[#allocation2 + $0x8] sm:$0xff] %v626
        %643 = vst [vmem:[#allocation2 + $0x10] sm:$0xff] %v627
        %644 = vst [vmem:[#allocation2 + $0x18] sm:$0xff] %v628
        %645 = vst [vmem:[#allocation2 + $0x20] sm:$0xff] %v629
        %646 = vst [vmem:[#allocation2 + $0x28] sm:$0xff] %v630
        %647 = vst [vmem:[#allocation2 + $0x30] sm:$0xff] %v631
        %648 = vst [vmem:[#allocation2 + $0x38] sm:$0xff] %v632
        %649 = vst [vmem:[#allocation2 + $0x40] sm:$0xff] %v633
        %650 = vst [vmem:[#allocation2 + $0x48] sm:$0xff] %v634
        %651 = vst [vmem:[#allocation2 + $0x50] sm:$0xff] %v635
        %652 = vst [vmem:[#allocation2 + $0x58] sm:$0xff] %v636
        %653 = vst [vmem:[#allocation2 + $0x60] sm:$0xff] %v637
        %654 = vst [vmem:[#allocation2 + $0x68] sm:$0xff] %v638
        %655 = vst [vmem:[#allocation2 + $0x70] sm:$0xff] %v639
        %656 = vst [vmem:[#allocation2 + $0x78] sm:$0xff] %v640
        %v657 = vpack.c.bf16 %v471, %v470
        %v658 = vpack.c.bf16 %v473, %v472
        %661 = vrot.lane.b32.xlu0 %v657, 127
        %v662 = vpop.permute.xlu0 %661
        %663 = vrot.lane.b32.xlu0 %v658, 127
        %v664 = vpop.permute.xlu0 %663
        %vm667 = vcmask 31744
        %668 = vst.msk [vmem:[#allocation2] sm:$0xff] %vm667, %v662
        %669 = vst.msk [vmem:[#allocation2 + $0x40] sm:$0xff] %vm667, %v664
        %v670 = vpack.c.bf16 %v502, %v494
        %v671 = vpack.c.bf16 %v503, %v495
        %v672 = vpack.c.bf16 %v504, %v496
        %v673 = vpack.c.bf16 %v505, %v497
        %v674 = vpack.c.bf16 %v506, %v498
        %v675 = vpack.c.bf16 %v507, %v499
        %v676 = vpack.c.bf16 %v508, %v500
        %v677 = vpack.c.bf16 %v509, %v501
        %v678 = vpack.c.bf16 %v518, %v510
        %v679 = vpack.c.bf16 %v519, %v511
        %v680 = vpack.c.bf16 %v520, %v512
        %v681 = vpack.c.bf16 %v521, %v513
        %v682 = vpack.c.bf16 %v522, %v514
        %v683 = vpack.c.bf16 %v523, %v515
        %v684 = vpack.c.bf16 %v524, %v516
        %v685 = vpack.c.bf16 %v525, %v517
        %686 = vst [vmem:[#allocation2 + $0x80] sm:$0xff] %v670
        %687 = vst [vmem:[#allocation2 + $0x88] sm:$0xff] %v671
        %688 = vst [vmem:[#allocation2 + $0x90] sm:$0xff] %v672
        %689 = vst [vmem:[#allocation2 + $0x98] sm:$0xff] %v673
        %690 = vst [vmem:[#allocation2 + $0xa0] sm:$0xff] %v674
        %691 = vst [vmem:[#allocation2 + $0xa8] sm:$0xff] %v675
        %692 = vst [vmem:[#allocation2 + $0xb0] sm:$0xff] %v676
        %693 = vst [vmem:[#allocation2 + $0xb8] sm:$0xff] %v677
        %694 = vst [vmem:[#allocation2 + $0xc0] sm:$0xff] %v678
        %695 = vst [vmem:[#allocation2 + $0xc8] sm:$0xff] %v679
        %696 = vst [vmem:[#allocation2 + $0xd0] sm:$0xff] %v680
        %697 = vst [vmem:[#allocation2 + $0xd8] sm:$0xff] %v681
        %698 = vst [vmem:[#allocation2 + $0xe0] sm:$0xff] %v682
        %699 = vst [vmem:[#allocation2 + $0xe8] sm:$0xff] %v683
        %700 = vst [vmem:[#allocation2 + $0xf0] sm:$0xff] %v684
        %701 = vst [vmem:[#allocation2 + $0xf8] sm:$0xff] %v685
        %702 = vrot.lane.b32.xlu0 %v494, 124
        %v703 = vpop.permute.xlu0 %702
        %704 = vrot.lane.b32.xlu0 %v502, 124
        %v705 = vpop.permute.xlu0 %704
        %706 = vrot.lane.b32.xlu0 %v510, 124
        %v707 = vpop.permute.xlu0 %706
        %708 = vrot.lane.b32.xlu0 %v518, 124
        %v709 = vpop.permute.xlu0 %708
        %710 = vrot.lane.b32.xlu0 %v495, 124
        %v711 = vpop.permute.xlu0 %710
        %712 = vrot.lane.b32.xlu0 %v503, 124
        %v713 = vpop.permute.xlu0 %712
        %714 = vrot.lane.b32.xlu0 %v511, 124
        %v715 = vpop.permute.xlu0 %714
        %716 = vrot.lane.b32.xlu0 %v519, 124
        %v717 = vpop.permute.xlu0 %716
        %718 = vrot.lane.b32.xlu0 %v496, 124
        %v719 = vpop.permute.xlu0 %718
        %720 = vrot.lane.b32.xlu0 %v504, 124
        %v721 = vpop.permute.xlu0 %720
        %722 = vrot.lane.b32.xlu0 %v512, 124
        %v723 = vpop.permute.xlu0 %722
        %724 = vrot.lane.b32.xlu0 %v520, 124
        %v725 = vpop.permute.xlu0 %724
        %726 = vrot.lane.b32.xlu0 %v497, 124
        %v727 = vpop.permute.xlu0 %726
        %728 = vrot.lane.b32.xlu0 %v505, 124
        %v729 = vpop.permute.xlu0 %728
        %730 = vrot.lane.b32.xlu0 %v513, 124
        %v731 = vpop.permute.xlu0 %730
        %732 = vrot.lane.b32.xlu0 %v521, 124
        %v733 = vpop.permute.xlu0 %732
        %734 = vrot.lane.b32.xlu0 %v498, 124
        %v735 = vpop.permute.xlu0 %734
        %736 = vrot.lane.b32.xlu0 %v506, 124
        %v737 = vpop.permute.xlu0 %736
        %738 = vrot.lane.b32.xlu0 %v514, 124
        %v739 = vpop.permute.xlu0 %738
        %740 = vrot.lane.b32.xlu0 %v522, 124
        %v741 = vpop.permute.xlu0 %740
        %742 = vrot.lane.b32.xlu0 %v499, 124
        %v743 = vpop.permute.xlu0 %742
        %744 = vrot.lane.b32.xlu0 %v507, 124
        %v745 = vpop.permute.xlu0 %744
        %746 = vrot.lane.b32.xlu0 %v515, 124
        %v747 = vpop.permute.xlu0 %746
        %748 = vrot.lane.b32.xlu0 %v523, 124
        %v749 = vpop.permute.xlu0 %748
        %750 = vrot.lane.b32.xlu0 %v500, 124
        %v751 = vpop.permute.xlu0 %750
        %752 = vrot.lane.b32.xlu0 %v508, 124
        %v753 = vpop.permute.xlu0 %752
        %754 = vrot.lane.b32.xlu0 %v516, 124
        %v755 = vpop.permute.xlu0 %754
        %756 = vrot.lane.b32.xlu0 %v524, 124
        %v757 = vpop.permute.xlu0 %756
        %758 = vrot.lane.b32.xlu0 %v501, 124
        %v759 = vpop.permute.xlu0 %758
        %760 = vrot.lane.b32.xlu0 %v509, 124
        %v761 = vpop.permute.xlu0 %760
        %762 = vrot.lane.b32.xlu0 %v517, 124
        %v763 = vpop.permute.xlu0 %762
        %764 = vrot.lane.b32.xlu0 %v525, 124
        %v765 = vpop.permute.xlu0 %764
        %vm766 = vcmp.lt.s32.totalorder %v591, 124
        %v767 = vsel %vm766, %v751, %v759
        %v768 = vsel %vm766, %v753, %v761
        %v769 = vsel %vm766, %v755, %v763
        %v770 = vsel %vm766, %v757, %v765
        %v771 = vsel %vm766, %v743, %v751
        %v772 = vsel %vm766, %v745, %v753
        %v773 = vsel %vm766, %v747, %v755
        %v774 = vsel %vm766, %v749, %v757
        %v775 = vsel %vm766, %v735, %v743
        %v776 = vsel %vm766, %v737, %v745
        %v777 = vsel %vm766, %v739, %v747
        %v778 = vsel %vm766, %v741, %v749
        %v779 = vsel %vm766, %v727, %v735
        %v780 = vsel %vm766, %v729, %v737
        %v781 = vsel %vm766, %v731, %v739
        %v782 = vsel %vm766, %v733, %v741
        %v783 = vsel %vm766, %v719, %v727
        %v784 = vsel %vm766, %v721, %v729
        %v785 = vsel %vm766, %v723, %v731
        %v786 = vsel %vm766, %v725, %v733
        %v787 = vsel %vm766, %v711, %v719
        %v788 = vsel %vm766, %v713, %v721
        %v789 = vsel %vm766, %v715, %v723
        %v790 = vsel %vm766, %v717, %v725
        %v791 = vsel %vm766, %v703, %v711
        %v792 = vsel %vm766, %v705, %v713
        %v793 = vsel %vm766, %v707, %v715
        %v794 = vsel %vm766, %v709, %v717
        %v795 = vsel %vm766, %v759, %v703
        %v796 = vsel %vm766, %v761, %v705
        %v797 = vsel %vm766, %v763, %v707
        %v798 = vsel %vm766, %v765, %v709
        %v799 = vpack.c.bf16 %v792, %v791
        %v800 = vpack.c.bf16 %v788, %v787
        %v801 = vpack.c.bf16 %v784, %v783
        %v802 = vpack.c.bf16 %v780, %v779
        %v803 = vpack.c.bf16 %v776, %v775
        %v804 = vpack.c.bf16 %v772, %v771
        %v805 = vpack.c.bf16 %v768, %v767
        %v806 = vpack.c.bf16 %v796, %v795
        %v807 = vpack.c.bf16 %v794, %v793
        %v808 = vpack.c.bf16 %v790, %v789
        %v809 = vpack.c.bf16 %v786, %v785
        %v810 = vpack.c.bf16 %v782, %v781
        %v811 = vpack.c.bf16 %v778, %v777
        %v812 = vpack.c.bf16 %v774, %v773
        %v813 = vpack.c.bf16 %v770, %v769
        %v814 = vpack.c.bf16 %v798, %v797
        %815 = vst [vmem:[#allocation2 + $0x100] sm:$0xff] %v799
        %816 = vst [vmem:[#allocation2 + $0x108] sm:$0xff] %v800
        %817 = vst [vmem:[#allocation2 + $0x110] sm:$0xff] %v801
        %818 = vst [vmem:[#allocation2 + $0x118] sm:$0xff] %v802
        %819 = vst [vmem:[#allocation2 + $0x120] sm:$0xff] %v803
        %820 = vst [vmem:[#allocation2 + $0x128] sm:$0xff] %v804
        %821 = vst [vmem:[#allocation2 + $0x130] sm:$0xff] %v805
        %822 = vst [vmem:[#allocation2 + $0x138] sm:$0xff] %v806
        %823 = vst [vmem:[#allocation2 + $0x140] sm:$0xff] %v807
        %824 = vst [vmem:[#allocation2 + $0x148] sm:$0xff] %v808
        %825 = vst [vmem:[#allocation2 + $0x150] sm:$0xff] %v809
        %826 = vst [vmem:[#allocation2 + $0x158] sm:$0xff] %v810
        %827 = vst [vmem:[#allocation2 + $0x160] sm:$0xff] %v811
        %828 = vst [vmem:[#allocation2 + $0x168] sm:$0xff] %v812
        %829 = vst [vmem:[#allocation2 + $0x170] sm:$0xff] %v813
        %830 = vst [vmem:[#allocation2 + $0x178] sm:$0xff] %v814
        %831 = vrot.lane.b32.xlu0 %v657, 119
        %v832 = vpop.permute.xlu0 %831
        %833 = vrot.lane.b32.xlu0 %v658, 119
        %v834 = vpop.permute.xlu0 %833
        %vm837 = vcmask 1048544
        %838 = vst.msk [vmem:[#allocation2 + $0x138] sm:$0xff] %vm837, %v832
        %839 = vst.msk [vmem:[#allocation2 + $0x178] sm:$0xff] %vm837, %v834
        %v840 = vld [vmem:[%s372] sm:$0xff]
        %v841 = vld [vmem:[%s372 + $0x8] sm:$0xff]
        %v842 = vld [vmem:[%s372 + $0x10] sm:$0xff]
        %v843 = vld [vmem:[%s372 + $0x18] sm:$0xff]
        %v844 = vld [vmem:[%s372 + $0x20] sm:$0xff]
        %v845 = vld [vmem:[%s372 + $0x28] sm:$0xff]
        %v846 = vld [vmem:[%s372 + $0x30] sm:$0xff]
        %v847 = vld [vmem:[%s372 + $0x38] sm:$0xff]
        %v848 = vld [vmem:[%s372 + $0x40] sm:$0xff]
        %v849 = vld [vmem:[%s372 + $0x48] sm:$0xff]
        %v850 = vld [vmem:[%s372 + $0x50] sm:$0xff]
        %v851 = vld [vmem:[%s372 + $0x58] sm:$0xff]
        %v852 = vld [vmem:[%s372 + $0x60] sm:$0xff]
        %v853 = vld [vmem:[%s372 + $0x68] sm:$0xff]
        %v854 = vld [vmem:[%s372 + $0x70] sm:$0xff]
        %v855 = vld [vmem:[%s372 + $0x78] sm:$0xff]
        %v856 = vpack.c.bf16 %v848, %v840
        %v857 = vpack.c.bf16 %v849, %v841
        %v858 = vpack.c.bf16 %v850, %v842
        %v859 = vpack.c.bf16 %v851, %v843
        %v860 = vpack.c.bf16 %v852, %v844
        %v861 = vpack.c.bf16 %v853, %v845
        %v862 = vpack.c.bf16 %v854, %v846
        %v863 = vpack.c.bf16 %v855, %v847
        %864 = vst [vmem:[#allocation2 + $0x180] sm:$0xff] %v856
        %865 = vst [vmem:[#allocation2 + $0x188] sm:$0xff] %v857
        %866 = vst [vmem:[#allocation2 + $0x190] sm:$0xff] %v858
        %867 = vst [vmem:[#allocation2 + $0x198] sm:$0xff] %v859
        %868 = vst [vmem:[#allocation2 + $0x1a0] sm:$0xff] %v860
        %869 = vst [vmem:[#allocation2 + $0x1a8] sm:$0xff] %v861
        %870 = vst [vmem:[#allocation2 + $0x1b0] sm:$0xff] %v862
        %871 = vst [vmem:[#allocation2 + $0x1b8] sm:$0xff] %v863
        %v872 = vld [vmem:[%s3] sm:$0xf]
        %v873 = vld [vmem:[%s3 + $0x4] sm:$0xf]
        %v874 = vld [vmem:[%s3 + $0x8] sm:$0xf]
        %v875 = vld [vmem:[%s3 + $0xc] sm:$0xf]
        %v876 = vld [vmem:[%s3 + $0x10] sm:$0xf]
        %v877 = vld [vmem:[%s3 + $0x14] sm:$0xf]
        %v878 = vld [vmem:[%s3 + $0x18] sm:$0xf]
        %v879 = vld [vmem:[%s3 + $0x1c] sm:$0xf]
        %v880 = vld [vmem:[#allocation2] sm:$0xff]
        %v881 = vld [vmem:[#allocation2 + $0x8] sm:$0xff]
        %v882 = vld [vmem:[#allocation2 + $0x10] sm:$0xff]
        %v883 = vld [vmem:[#allocation2 + $0x18] sm:$0xff]
        %v884 = vld [vmem:[#allocation2 + $0x20] sm:$0xff]
        %v885 = vld [vmem:[#allocation2 + $0x28] sm:$0xff]
        %v886 = vld [vmem:[#allocation2 + $0x30] sm:$0xff]
        %v887 = vld [vmem:[#allocation2 + $0x38] sm:$0xff]
        %v888 = vld [vmem:[#allocation2 + $0x40] sm:$0xff]
        %v889 = vld [vmem:[#allocation2 + $0x48] sm:$0xff]
        %v890 = vld [vmem:[#allocation2 + $0x50] sm:$0xff]
        %v891 = vld [vmem:[#allocation2 + $0x58] sm:$0xff]
        %v892 = vld [vmem:[#allocation2 + $0x60] sm:$0xff]
        %v893 = vld [vmem:[#allocation2 + $0x68] sm:$0xff]
        %v894 = vld [vmem:[#allocation2 + $0x70] sm:$0xff]
        %v895 = vld [vmem:[#allocation2 + $0x78] sm:$0xff]
        %v896 = vld [vmem:[#allocation2 + $0x80] sm:$0xff]
        %v897 = vld [vmem:[#allocation2 + $0x88] sm:$0xff]
        %v898 = vld [vmem:[#allocation2 + $0x90] sm:$0xff]
        %v899 = vld [vmem:[#allocation2 + $0x98] sm:$0xff]
        %v900 = vld [vmem:[#allocation2 + $0xa0] sm:$0xff]
        %v901 = vld [vmem:[#allocation2 + $0xa8] sm:$0xff]
        %v902 = vld [vmem:[#allocation2 + $0xb0] sm:$0xff]
        %v903 = vld [vmem:[#allocation2 + $0xb8] sm:$0xff]
        %v904 = vld [vmem:[#allocation2 + $0xc0] sm:$0xff]
        %v905 = vld [vmem:[#allocation2 + $0xc8] sm:$0xff]
        %v906 = vld [vmem:[#allocation2 + $0xd0] sm:$0xff]
        %v907 = vld [vmem:[#allocation2 + $0xd8] sm:$0xff]
        %v908 = vld [vmem:[#allocation2 + $0xe0] sm:$0xff]
        %v909 = vld [vmem:[#allocation2 + $0xe8] sm:$0xff]
        %v910 = vld [vmem:[#allocation2 + $0xf0] sm:$0xff]
        %v911 = vld [vmem:[#allocation2 + $0xf8] sm:$0xff]
        %v912 = vld [vmem:[#allocation2 + $0x100] sm:$0xff]
        %v913 = vld [vmem:[#allocation2 + $0x108] sm:$0xff]
        %v914 = vld [vmem:[#allocation2 + $0x110] sm:$0xff]
        %v915 = vld [vmem:[#allocation2 + $0x118] sm:$0xff]
        %v916 = vld [vmem:[#allocation2 + $0x120] sm:$0xff]
        %v917 = vld [vmem:[#allocation2 + $0x128] sm:$0xff]
        %v918 = vld [vmem:[#allocation2 + $0x130] sm:$0xff]
        %v919 = vld [vmem:[#allocation2 + $0x138] sm:$0xff]
        %v920 = vld [vmem:[#allocation2 + $0x140] sm:$0xff]
        %v921 = vld [vmem:[#allocation2 + $0x148] sm:$0xff]
        %v922 = vld [vmem:[#allocation2 + $0x150] sm:$0xff]
        %v923 = vld [vmem:[#allocation2 + $0x158] sm:$0xff]
        %v924 = vld [vmem:[#allocation2 + $0x160] sm:$0xff]
        %v925 = vld [vmem:[#allocation2 + $0x168] sm:$0xff]
        %v926 = vld [vmem:[#allocation2 + $0x170] sm:$0xff]
        %v927 = vld [vmem:[#allocation2 + $0x178] sm:$0xff]
        %v928 = vld [vmem:[#allocation2 + $0x180] sm:$0xff]
        %v929 = vld [vmem:[#allocation2 + $0x188] sm:$0xff]
        %v930 = vld [vmem:[#allocation2 + $0x190] sm:$0xff]
        %v931 = vld [vmem:[#allocation2 + $0x198] sm:$0xff]
        %v932 = vld [vmem:[#allocation2 + $0x1a0] sm:$0xff]
        %v933 = vld [vmem:[#allocation2 + $0x1a8] sm:$0xff]
        %v934 = vld [vmem:[#allocation2 + $0x1b0] sm:$0xff]
        %v935 = vld [vmem:[#allocation2 + $0x1b8] sm:$0xff]
        %v936 = vld [vmem:[%s4] sm:$0xff]
        %v937 = vld [vmem:[%s4 + $0x8] sm:$0xff]
        %v938 = vld [vmem:[%s4 + $0x10] sm:$0xff]
        %v939 = vld [vmem:[%s4 + $0x18] sm:$0xff]
        %v940 = vld [vmem:[%s4 + $0x20] sm:$0xff]
        %v941 = vld [vmem:[%s4 + $0x28] sm:$0xff]
        %v942 = vld [vmem:[%s4 + $0x30] sm:$0xff]
        %v943 = vld [vmem:[%s4 + $0x38] sm:$0xff]
        %945 = vset.pattern.permute.xlu0 0
        %946 = vperm.xlu0 %945, %v936
        %v947 = vpop.permute.xlu0 %946
        %950 = vset.pattern.permute.xlu0 0
        %951 = vperm.xlu0 %950, %v937
        %v952 = vpop.permute.xlu0 %951
        %955 = vset.pattern.permute.xlu0 0
        %956 = vperm.xlu0 %955, %v938
        %v957 = vpop.permute.xlu0 %956
        %960 = vset.pattern.permute.xlu0 0
        %961 = vperm.xlu0 %960, %v939
        %v962 = vpop.permute.xlu0 %961
        %965 = vset.pattern.permute.xlu0 0
        %966 = vperm.xlu0 %965, %v940
        %v967 = vpop.permute.xlu0 %966
        %970 = vset.pattern.permute.xlu0 0
        %971 = vperm.xlu0 %970, %v941
        %v972 = vpop.permute.xlu0 %971
        %975 = vset.pattern.permute.xlu0 0
        %976 = vperm.xlu0 %975, %v942
        %v977 = vpop.permute.xlu0 %976
        %980 = vset.pattern.permute.xlu0 0
        %981 = vperm.xlu0 %980, %v943
        %v982 = vpop.permute.xlu0 %981
        %v992 = vunpack.c.l.b16 %v872
        %v993 = vunpack.c.l.b16 %v873
        %v994 = vunpack.c.l.b16 %v874
        %v995 = vunpack.c.l.b16 %v875
        %v996 = vunpack.c.l.b16 %v876
        %v997 = vunpack.c.l.b16 %v877
        %v998 = vunpack.c.l.b16 %v878
        %v999 = vunpack.c.l.b16 %v879
        %v1000 = vpack.c.b16 %v993, %v992
        %v1001 = vpack.c.b16 %v995, %v994
        %v1002 = vpack.c.b16 %v997, %v996
        %v1003 = vpack.c.b16 %v999, %v998
        %vm1004 = vcmask 916480
        %v1006 = vsel %vm1004, %v1000, 0
        %v1009 = vsel %vm1004, %v1001, 0
        %v1012 = vsel %vm1004, %v1002, 0
        %v1015 = vsel %vm1004, %v1003, 0
        %1017 = vmatprep.subr.bf16.mxu0 %v881
        %1018 = vmatpush1.bf16.msra.mxu0 %v880
        %1019 = vmatprep.subr.bf16.mxu0 %v889
        %1020 = vmatpush1.bf16.msra.mxu0 %v888
        %1021 = vmatprep.subr.bf16.mxu0 %v897
        %1022 = vmatpush1.bf16.msra.mxu0 %v896
        %1023 = vmatprep.subr.bf16.mxu0 %v905
        %1024 = vmatpush1.bf16.msra.mxu0 %v904
        %1025 = vmatprep.subr.bf16.mxu0 %v913
        %1026 = vmatpush1.bf16.msra.mxu0 %v912
        %1027 = vmatprep.subr.bf16.mxu0 %v921
        %1028 = vmatpush1.bf16.msra.mxu0 %v920
        %1029 = vmatprep.subr.bf16.mxu0 %v929
        %1030 = vmatpush1.bf16.msra.mxu0 %v928
        %1031 = vmatprep.subr.bf16.mxu0 0
        %1032 = vmatpush1.bf16.msra.mxu0 0
        %1033 = vmatprep.subr.bf16.mxu0 0
        %1034 = vmatpush1.bf16.msra.mxu0 0
        %1035 = vmatprep.subr.bf16.mxu0 0
        %1036 = vmatpush1.bf16.msra.mxu0 0
        %1037 = vmatprep.subr.bf16.mxu0 0
        %1038 = vmatpush1.bf16.msra.mxu0 0
        %1039 = vmatprep.subr.bf16.mxu0 0
        %1040 = vmatpush1.bf16.msra.mxu0 0
        %1041 = vmatprep.subr.bf16.mxu0 0
        %1042 = vmatpush1.bf16.msra.mxu0 0
        %1043 = vmatprep.subr.bf16.mxu0 0
        %1044 = vmatpush1.bf16.msra.mxu0 0
        %1045 = vmatprep.subr.bf16.mxu0 0
        %1046 = vmatpush1.bf16.msra.mxu0 0
        %1047 = vmatprep.subr.bf16.mxu0 0
        %1048 = vmatpush1.bf16.msra.mxu0 0
        %1049 = vmatprep.mubr.bf16.mxu0 0
        %1050 = vmatmul.mubr.bf16.gmra.mrb[0].mxu0 %v1006
        %v1051 = vpop.f32.mrb[0].mxu0
        %v1052 = vadd.f32 %v947, %v1051
        %v1053 = vpop.f32.mrb[0].mxu0
        %v1054 = vadd.f32 %v947, %v1053
        %v1055 = vpop.f32.mrb[0].mxu0
        %v1056 = vadd.f32 %v952, %v1055
        %v1057 = vpop.f32.mrb[0].mxu0
        %v1058 = vadd.f32 %v952, %v1057
        %1059 = vmatprep.mubr.bf16.mxu0 0
        %1060 = vmatmul.mubr.bf16.gmra.mrb[0].mxu0 %v1009
        %v1061 = vpop.f32.mrb[0].mxu0
        %v1062 = vadd.f32 %v957, %v1061
        %v1063 = vpop.f32.mrb[0].mxu0
        %v1064 = vadd.f32 %v957, %v1063
        %v1065 = vpop.f32.mrb[0].mxu0
        %v1066 = vadd.f32 %v962, %v1065
        %v1067 = vpop.f32.mrb[0].mxu0
        %v1068 = vadd.f32 %v962, %v1067
        %1069 = vmatprep.mubr.bf16.mxu0 0
        %1070 = vmatmul.mubr.bf16.gmra.mrb[0].mxu0 %v1012
        %v1071 = vpop.f32.mrb[0].mxu0
        %v1072 = vadd.f32 %v967, %v1071
        %v1073 = vpop.f32.mrb[0].mxu0
        %v1074 = vadd.f32 %v967, %v1073
        %v1075 = vpop.f32.mrb[0].mxu0
        %v1076 = vadd.f32 %v972, %v1075
        %v1077 = vpop.f32.mrb[0].mxu0
        %v1078 = vadd.f32 %v972, %v1077
        %1079 = vmatprep.mubr.bf16.mxu0 0
        %1080 = vmatmul.mubr.bf16.gmra.mrb[0].mxu0 %v1015
        %v1081 = vpop.f32.mrb[0].mxu0
        %v1082 = vadd.f32 %v977, %v1081
        %v1083 = vpop.f32.mrb[0].mxu0
        %v1084 = vadd.f32 %v977, %v1083
        %v1085 = vpop.f32.mrb[0].mxu0
        %v1086 = vadd.f32 %v982, %v1085
        %v1087 = vpop.f32.mrb[0].mxu0
        %v1088 = vadd.f32 %v982, %v1087
        %1089 = vdwg.mxu0
        %1090 = vmatprep.subr.bf16.mxu0 %v883
        %1091 = vmatpush1.bf16.msra.mxu0 %v882
        %1092 = vmatprep.subr.bf16.mxu0 %v891
        %1093 = vmatpush1.bf16.msra.mxu0 %v890
        %1094 = vmatprep.subr.bf16.mxu0 %v899
        %1095 = vmatpush1.bf16.msra.mxu0 %v898
        %1096 = vmatprep.subr.bf16.mxu0 %v907
        %1097 = vmatpush1.bf16.msra.mxu0 %v906
        %1098 = vmatprep.subr.bf16.mxu0 %v915
        %1099 = vmatpush1.bf16.msra.mxu0 %v914
        %1100 = vmatprep.subr.bf16.mxu0 %v923
        %1101 = vmatpush1.bf16.msra.mxu0 %v922
        %1102 = vmatprep.subr.bf16.mxu0 %v931
        %1103 = vmatpush1.bf16.msra.mxu0 %v930
        %1104 = vmatprep.subr.bf16.mxu0 0
        %1105 = vmatpush1.bf16.msra.mxu0 0
        %1106 = vmatprep.subr.bf16.mxu0 0
        %1107 = vmatpush1.bf16.msra.mxu0 0
        %1108 = vmatprep.subr.bf16.mxu0 0
        %1109 = vmatpush1.bf16.msra.mxu0 0
        %1110 = vmatprep.subr.bf16.mxu0 0
        %1111 = vmatpush1.bf16.msra.mxu0 0
        %1112 = vmatprep.subr.bf16.mxu0 0
        %1113 = vmatpush1.bf16.msra.mxu0 0
        %1114 = vmatprep.subr.bf16.mxu0 0
        %1115 = vmatpush1.bf16.msra.mxu0 0
        %1116 = vmatprep.subr.bf16.mxu0 0
        %1117 = vmatpush1.bf16.msra.mxu0 0
        %1118 = vmatprep.subr.bf16.mxu0 0
        %1119 = vmatpush1.bf16.msra.mxu0 0
        %1120 = vmatprep.subr.bf16.mxu0 0
        %1121 = vmatpush1.bf16.msra.mxu0 0
        %1122 = vmatprep.mubr.bf16.mxu0 0
        %1123 = vmatmul.mubr.bf16.gmra.mrb[0].mxu0 %v1006
        %v1124 = vpop.f32.mrb[0].mxu0
        %v1125 = vadd.f32 %v947, %v1124
        %v1126 = vpop.f32.mrb[0].mxu0
        %v1127 = vadd.f32 %v947, %v1126
        %v1128 = vpop.f32.mrb[0].mxu0
        %v1129 = vadd.f32 %v952, %v1128
        %v1130 = vpop.f32.mrb[0].mxu0
        %v1131 = vadd.f32 %v952, %v1130
        %1132 = vmatprep.mubr.bf16.mxu0 0
        %1133 = vmatmul.mubr.bf16.gmra.mrb[0].mxu0 %v1009
        %v1134 = vpop.f32.mrb[0].mxu0
        %v1135 = vadd.f32 %v957, %v1134
        %v1136 = vpop.f32.mrb[0].mxu0
        %v1137 = vadd.f32 %v957, %v1136
        %v1138 = vpop.f32.mrb[0].mxu0
        %v1139 = vadd.f32 %v962, %v1138
        %v1140 = vpop.f32.mrb[0].mxu0
        %v1141 = vadd.f32 %v962, %v1140
        %1142 = vmatprep.mubr.bf16.mxu0 0
        %1143 = vmatmul.mubr.bf16.gmra.mrb[0].mxu0 %v1012
        %v1144 = vpop.f32.mrb[0].mxu0
        %v1145 = vadd.f32 %v967, %v1144
        %v1146 = vpop.f32.mrb[0].mxu0
        %v1147 = vadd.f32 %v967, %v1146
        %v1148 = vpop.f32.mrb[0].mxu0
        %v1149 = vadd.f32 %v972, %v1148
        %v1150 = vpop.f32.mrb[0].mxu0
        %v1151 = vadd.f32 %v972, %v1150
        %1152 = vmatprep.mubr.bf16.mxu0 0
        %1153 = vmatmul.mubr.bf16.gmra.mrb[0].mxu0 %v1015
        %v1154 = vpop.f32.mrb[0].mxu0
        %v1155 = vadd.f32 %v977, %v1154
        %v1156 = vpop.f32.mrb[0].mxu0
        %v1157 = vadd.f32 %v977, %v1156
        %v1158 = vpop.f32.mrb[0].mxu0
        %v1159 = vadd.f32 %v982, %v1158
        %v1160 = vpop.f32.mrb[0].mxu0
        %v1161 = vadd.f32 %v982, %v1160
        %1162 = vdwg.mxu0
        %1163 = vmatprep.subr.bf16.mxu0 %v885
        %1164 = vmatpush1.bf16.msra.mxu0 %v884
        %1165 = vmatprep.subr.bf16.mxu0 %v893
        %1166 = vmatpush1.bf16.msra.mxu0 %v892
        %1167 = vmatprep.subr.bf16.mxu0 %v901
        %1168 = vmatpush1.bf16.msra.mxu0 %v900
        %1169 = vmatprep.subr.bf16.mxu0 %v909
        %1170 = vmatpush1.bf16.msra.mxu0 %v908
        %1171 = vmatprep.subr.bf16.mxu0 %v917
        %1172 = vmatpush1.bf16.msra.mxu0 %v916
        %1173 = vmatprep.subr.bf16.mxu0 %v925
        %1174 = vmatpush1.bf16.msra.mxu0 %v924
        %1175 = vmatprep.subr.bf16.mxu0 %v933
        %1176 = vmatpush1.bf16.msra.mxu0 %v932
        %1177 = vmatprep.subr.bf16.mxu0 0
        %1178 = vmatpush1.bf16.msra.mxu0 0
        %1179 = vmatprep.subr.bf16.mxu0 0
        %1180 = vmatpush1.bf16.msra.mxu0 0
        %1181 = vmatprep.subr.bf16.mxu0 0
        %1182 = vmatpush1.bf16.msra.mxu0 0
        %1183 = vmatprep.subr.bf16.mxu0 0
        %1184 = vmatpush1.bf16.msra.mxu0 0
        %1185 = vmatprep.subr.bf16.mxu0 0
        %1186 = vmatpush1.bf16.msra.mxu0 0
        %1187 = vmatprep.subr.bf16.mxu0 0
        %1188 = vmatpush1.bf16.msra.mxu0 0
        %1189 = vmatprep.subr.bf16.mxu0 0
        %1190 = vmatpush1.bf16.msra.mxu0 0
        %1191 = vmatprep.subr.bf16.mxu0 0
        %1192 = vmatpush1.bf16.msra.mxu0 0
        %1193 = vmatprep.subr.bf16.mxu0 0
        %1194 = vmatpush1.bf16.msra.mxu0 0
        %1195 = vmatprep.mubr.bf16.mxu0 0
        %1196 = vmatmul.mubr.bf16.gmra.mrb[0].mxu0 %v1006
        %v1197 = vpop.f32.mrb[0].mxu0
        %v1198 = vadd.f32 %v947, %v1197
        %v1199 = vpop.f32.mrb[0].mxu0
        %v1200 = vadd.f32 %v947, %v1199
        %v1201 = vpop.f32.mrb[0].mxu0
        %v1202 = vadd.f32 %v952, %v1201
        %v1203 = vpop.f32.mrb[0].mxu0
        %v1204 = vadd.f32 %v952, %v1203
        %1205 = vmatprep.mubr.bf16.mxu0 0
        %1206 = vmatmul.mubr.bf16.gmra.mrb[0].mxu0 %v1009
        %v1207 = vpop.f32.mrb[0].mxu0
        %v1208 = vadd.f32 %v957, %v1207
        %v1209 = vpop.f32.mrb[0].mxu0
        %v1210 = vadd.f32 %v957, %v1209
        %v1211 = vpop.f32.mrb[0].mxu0
        %v1212 = vadd.f32 %v962, %v1211
        %v1213 = vpop.f32.mrb[0].mxu0
        %v1214 = vadd.f32 %v962, %v1213
        %1215 = vmatprep.mubr.bf16.mxu0 0
        %1216 = vmatmul.mubr.bf16.gmra.mrb[0].mxu0 %v1012
        %v1217 = vpop.f32.mrb[0].mxu0
        %v1218 = vadd.f32 %v967, %v1217
        %v1219 = vpop.f32.mrb[0].mxu0
        %v1220 = vadd.f32 %v967, %v1219
        %v1221 = vpop.f32.mrb[0].mxu0
        %v1222 = vadd.f32 %v972, %v1221
        %v1223 = vpop.f32.mrb[0].mxu0
        %v1224 = vadd.f32 %v972, %v1223
        %1225 = vmatprep.mubr.bf16.mxu0 0
        %1226 = vmatmul.mubr.bf16.gmra.mrb[0].mxu0 %v1015
        %v1227 = vpop.f32.mrb[0].mxu0
        %v1228 = vadd.f32 %v977, %v1227
        %v1229 = vpop.f32.mrb[0].mxu0
        %v1230 = vadd.f32 %v977, %v1229
        %v1231 = vpop.f32.mrb[0].mxu0
        %v1232 = vadd.f32 %v982, %v1231
        %v1233 = vpop.f32.mrb[0].mxu0
        %v1234 = vadd.f32 %v982, %v1233
        %1235 = vdwg.mxu0
        %1236 = vmatprep.subr.bf16.mxu0 %v887
        %1237 = vmatpush1.bf16.msra.mxu0 %v886
        %1238 = vmatprep.subr.bf16.mxu0 %v895
        %1239 = vmatpush1.bf16.msra.mxu0 %v894
        %1240 = vmatprep.subr.bf16.mxu0 %v903
        %1241 = vmatpush1.bf16.msra.mxu0 %v902
        %1242 = vmatprep.subr.bf16.mxu0 %v911
        %1243 = vmatpush1.bf16.msra.mxu0 %v910
        %1244 = vmatprep.subr.bf16.mxu0 %v919
        %1245 = vmatpush1.bf16.msra.mxu0 %v918
        %1246 = vmatprep.subr.bf16.mxu0 %v927
        %1247 = vmatpush1.bf16.msra.mxu0 %v926
        %1248 = vmatprep.subr.bf16.mxu0 %v935
        %1249 = vmatpush1.bf16.msra.mxu0 %v934
        %1250 = vmatprep.subr.bf16.mxu0 0
        %1251 = vmatpush1.bf16.msra.mxu0 0
        %1252 = vmatprep.subr.bf16.mxu0 0
        %1253 = vmatpush1.bf16.msra.mxu0 0
        %1254 = vmatprep.subr.bf16.mxu0 0
        %1255 = vmatpush1.bf16.msra.mxu0 0
        %1256 = vmatprep.subr.bf16.mxu0 0
        %1257 = vmatpush1.bf16.msra.mxu0 0
        %1258 = vmatprep.subr.bf16.mxu0 0
        %1259 = vmatpush1.bf16.msra.mxu0 0
        %1260 = vmatprep.subr.bf16.mxu0 0
        %1261 = vmatpush1.bf16.msra.mxu0 0
        %1262 = vmatprep.subr.bf16.mxu0 0
        %1263 = vmatpush1.bf16.msra.mxu0 0
        %1264 = vmatprep.subr.bf16.mxu0 0
        %1265 = vmatpush1.bf16.msra.mxu0 0
        %1266 = vmatprep.subr.bf16.mxu0 0
        %1267 = vmatpush1.bf16.msra.mxu0 0
        %1268 = vmatprep.mubr.bf16.mxu0 0
        %1269 = vmatmul.mubr.bf16.gmra.mrb[0].mxu0 %v1006
        %v1270 = vpop.f32.mrb[0].mxu0
        %v1271 = vadd.f32 %v947, %v1270
        %v1272 = vpop.f32.mrb[0].mxu0
        %v1273 = vadd.f32 %v947, %v1272
        %v1274 = vpop.f32.mrb[0].mxu0
        %v1275 = vadd.f32 %v952, %v1274
        %v1276 = vpop.f32.mrb[0].mxu0
        %v1277 = vadd.f32 %v952, %v1276
        %1278 = vmatprep.mubr.bf16.mxu0 0
        %1279 = vmatmul.mubr.bf16.gmra.mrb[0].mxu0 %v1009
        %v1280 = vpop.f32.mrb[0].mxu0
        %v1281 = vadd.f32 %v957, %v1280
        %v1282 = vpop.f32.mrb[0].mxu0
        %v1283 = vadd.f32 %v957, %v1282
        %v1284 = vpop.f32.mrb[0].mxu0
        %v1285 = vadd.f32 %v962, %v1284
        %v1286 = vpop.f32.mrb[0].mxu0
        %v1287 = vadd.f32 %v962, %v1286
        %1288 = vmatprep.mubr.bf16.mxu0 0
        %1289 = vmatmul.mubr.bf16.gmra.mrb[0].mxu0 %v1012
        %v1290 = vpop.f32.mrb[0].mxu0
        %v1291 = vadd.f32 %v967, %v1290
        %v1292 = vpop.f32.mrb[0].mxu0
        %v1293 = vadd.f32 %v967, %v1292
        %v1294 = vpop.f32.mrb[0].mxu0
        %v1295 = vadd.f32 %v972, %v1294
        %v1296 = vpop.f32.mrb[0].mxu0
        %v1297 = vadd.f32 %v972, %v1296
        %1298 = vmatprep.mubr.bf16.mxu0 0
        %1299 = vmatmul.mubr.bf16.gmra.mrb[0].mxu0 %v1015
        %v1300 = vpop.f32.mrb[0].mxu0
        %v1301 = vadd.f32 %v977, %v1300
        %v1302 = vpop.f32.mrb[0].mxu0
        %v1303 = vadd.f32 %v977, %v1302
        %v1304 = vpop.f32.mrb[0].mxu0
        %v1305 = vadd.f32 %v982, %v1304
        %v1306 = vpop.f32.mrb[0].mxu0
        %v1307 = vadd.f32 %v982, %v1306
        %1308 = vdwg.mxu0
        %v1309 = vxor.u32 %v1052, 2147483648
        %v1310 = vxor.u32 %v1054, 2147483648
        %v1311 = vxor.u32 %v1125, 2147483648
        %v1312 = vxor.u32 %v1127, 2147483648
        %v1313 = vxor.u32 %v1198, 2147483648
        %v1314 = vxor.u32 %v1200, 2147483648
        %v1315 = vxor.u32 %v1271, 2147483648
        %v1316 = vxor.u32 %v1273, 2147483648
        %v1317 = vxor.u32 %v1056, 2147483648
        %v1318 = vxor.u32 %v1058, 2147483648
        %v1319 = vxor.u32 %v1129, 2147483648
        %v1320 = vxor.u32 %v1131, 2147483648
        %v1321 = vxor.u32 %v1202, 2147483648
        %v1322 = vxor.u32 %v1204, 2147483648
        %v1323 = vxor.u32 %v1275, 2147483648
        %v1324 = vxor.u32 %v1277, 2147483648
        %v1325 = vxor.u32 %v1062, 2147483648
        %v1326 = vxor.u32 %v1064, 2147483648
        %v1327 = vxor.u32 %v1135, 2147483648
        %v1328 = vxor.u32 %v1137, 2147483648
        %v1329 = vxor.u32 %v1208, 2147483648
        %v1330 = vxor.u32 %v1210, 2147483648
        %v1331 = vxor.u32 %v1281, 2147483648
        %v1332 = vxor.u32 %v1283, 2147483648
        %v1333 = vxor.u32 %v1066, 2147483648
        %v1334 = vxor.u32 %v1068, 2147483648
        %v1335 = vxor.u32 %v1139, 2147483648
        %v1336 = vxor.u32 %v1141, 2147483648
        %v1337 = vxor.u32 %v1212, 2147483648
        %v1338 = vxor.u32 %v1214, 2147483648
        %v1339 = vxor.u32 %v1285, 2147483648
        %v1340 = vxor.u32 %v1287, 2147483648
        %v1341 = vmul.f32 %v1309, 1.442695
        %v1342 = vpow.pop %v1341
        %v1343 = vmul.f32 %v1310, 1.442695
        %v1344 = vpow.pop %v1343
        %v1345 = vmul.f32 %v1311, 1.442695
        %v1346 = vpow.pop %v1345
        %v1347 = vmul.f32 %v1312, 1.442695
        %v1348 = vpow.pop %v1347
        %v1349 = vmul.f32 %v1313, 1.442695
        %v1350 = vpow.pop %v1349
        %v1351 = vmul.f32 %v1314, 1.442695
        %v1352 = vpow.pop %v1351
        %v1353 = vmul.f32 %v1315, 1.442695
        %v1354 = vpow.pop %v1353
        %v1355 = vmul.f32 %v1316, 1.442695
        %v1356 = vpow.pop %v1355
        %v1357 = vmul.f32 %v1317, 1.442695
        %v1358 = vpow.pop %v1357
        %v1359 = vmul.f32 %v1318, 1.442695
        %v1360 = vpow.pop %v1359
        %v1361 = vmul.f32 %v1319, 1.442695
        %v1362 = vpow.pop %v1361
        %v1363 = vmul.f32 %v1320, 1.442695
        %v1364 = vpow.pop %v1363
        %v1365 = vmul.f32 %v1321, 1.442695
        %v1366 = vpow.pop %v1365
        %v1367 = vmul.f32 %v1322, 1.442695
        %v1368 = vpow.pop %v1367
        %v1369 = vmul.f32 %v1323, 1.442695
        %v1370 = vpow.pop %v1369
        %v1371 = vmul.f32 %v1324, 1.442695
        %v1372 = vpow.pop %v1371
        %v1373 = vmul.f32 %v1325, 1.442695
        %v1374 = vpow.pop %v1373
        %v1375 = vmul.f32 %v1326, 1.442695
        %v1376 = vpow.pop %v1375
        %v1377 = vmul.f32 %v1327, 1.442695
        %v1378 = vpow.pop %v1377
        %v1379 = vmul.f32 %v1328, 1.442695
        %v1380 = vpow.pop %v1379
        %v1381 = vmul.f32 %v1329, 1.442695
        %v1382 = vpow.pop %v1381
        %v1383 = vmul.f32 %v1330, 1.442695
        %v1384 = vpow.pop %v1383
        %v1385 = vmul.f32 %v1331, 1.442695
        %v1386 = vpow.pop %v1385
        %v1387 = vmul.f32 %v1332, 1.442695
        %v1388 = vpow.pop %v1387
        %v1389 = vmul.f32 %v1333, 1.442695
        %v1390 = vpow.pop %v1389
        %v1391 = vmul.f32 %v1334, 1.442695
        %v1392 = vpow.pop %v1391
        %v1393 = vmul.f32 %v1335, 1.442695
        %v1394 = vpow.pop %v1393
        %v1395 = vmul.f32 %v1336, 1.442695
        %v1396 = vpow.pop %v1395
        %v1397 = vmul.f32 %v1337, 1.442695
        %v1398 = vpow.pop %v1397
        %v1399 = vmul.f32 %v1338, 1.442695
        %v1400 = vpow.pop %v1399
        %v1401 = vmul.f32 %v1339, 1.442695
        %v1402 = vpow.pop %v1401
        %v1403 = vmul.f32 %v1340, 1.442695
        %v1404 = vpow.pop %v1403
        %v1405 = vadd.f32 %v1342, 1.0
        %v1406 = vadd.f32 %v1344, 1.0
        %v1407 = vadd.f32 %v1346, 1.0
        %v1408 = vadd.f32 %v1348, 1.0
        %v1409 = vadd.f32 %v1350, 1.0
        %v1410 = vadd.f32 %v1352, 1.0
        %v1411 = vadd.f32 %v1354, 1.0
        %v1412 = vadd.f32 %v1356, 1.0
        %v1413 = vadd.f32 %v1358, 1.0
        %v1414 = vadd.f32 %v1360, 1.0
        %v1415 = vadd.f32 %v1362, 1.0
        %v1416 = vadd.f32 %v1364, 1.0
        %v1417 = vadd.f32 %v1366, 1.0
        %v1418 = vadd.f32 %v1368, 1.0
        %v1419 = vadd.f32 %v1370, 1.0
        %v1420 = vadd.f32 %v1372, 1.0
        %v1421 = vadd.f32 %v1374, 1.0
        %v1422 = vadd.f32 %v1376, 1.0
        %v1423 = vadd.f32 %v1378, 1.0
        %v1424 = vadd.f32 %v1380, 1.0
        %v1425 = vadd.f32 %v1382, 1.0
        %v1426 = vadd.f32 %v1384, 1.0
        %v1427 = vadd.f32 %v1386, 1.0
        %v1428 = vadd.f32 %v1388, 1.0
        %v1429 = vadd.f32 %v1390, 1.0
        %v1430 = vadd.f32 %v1392, 1.0
        %v1431 = vadd.f32 %v1394, 1.0
        %v1432 = vadd.f32 %v1396, 1.0
        %v1433 = vadd.f32 %v1398, 1.0
        %v1434 = vadd.f32 %v1400, 1.0
        %v1435 = vadd.f32 %v1402, 1.0
        %v1436 = vadd.f32 %v1404, 1.0
        %v1437 = vrcp.pop %v1405
        %v1438 = vmul.f32 1.0, %v1437
        %v1439 = vrcp.pop %v1406
        %v1440 = vmul.f32 1.0, %v1439
        %v1441 = vrcp.pop %v1407
        %v1442 = vmul.f32 1.0, %v1441
        %v1443 = vrcp.pop %v1408
        %v1444 = vmul.f32 1.0, %v1443
        %v1445 = vrcp.pop %v1409
        %v1446 = vmul.f32 1.0, %v1445
        %v1447 = vrcp.pop %v1410
        %v1448 = vmul.f32 1.0, %v1447
        %v1449 = vrcp.pop %v1411
        %v1450 = vmul.f32 1.0, %v1449
        %v1451 = vrcp.pop %v1412
        %v1452 = vmul.f32 1.0, %v1451
        %v1453 = vrcp.pop %v1413
        %v1454 = vmul.f32 1.0, %v1453
        %v1455 = vrcp.pop %v1414
        %v1456 = vmul.f32 1.0, %v1455
        %v1457 = vrcp.pop %v1415
        %v1458 = vmul.f32 1.0, %v1457
        %v1459 = vrcp.pop %v1416
        %v1460 = vmul.f32 1.0, %v1459
        %v1461 = vrcp.pop %v1417
        %v1462 = vmul.f32 1.0, %v1461
        %v1463 = vrcp.pop %v1418
        %v1464 = vmul.f32 1.0, %v1463
        %v1465 = vrcp.pop %v1419
        %v1466 = vmul.f32 1.0, %v1465
        %v1467 = vrcp.pop %v1420
        %v1468 = vmul.f32 1.0, %v1467
        %v1469 = vrcp.pop %v1421
        %v1470 = vmul.f32 1.0, %v1469
        %v1471 = vrcp.pop %v1422
        %v1472 = vmul.f32 1.0, %v1471
        %v1473 = vrcp.pop %v1423
        %v1474 = vmul.f32 1.0, %v1473
        %v1475 = vrcp.pop %v1424
        %v1476 = vmul.f32 1.0, %v1475
        %v1477 = vrcp.pop %v1425
        %v1478 = vmul.f32 1.0, %v1477
        %v1479 = vrcp.pop %v1426
        %v1480 = vmul.f32 1.0, %v1479
        %v1481 = vrcp.pop %v1427
        %v1482 = vmul.f32 1.0, %v1481
        %v1483 = vrcp.pop %v1428
        %v1484 = vmul.f32 1.0, %v1483
        %v1485 = vrcp.pop %v1429
        %v1486 = vmul.f32 1.0, %v1485
        %v1487 = vrcp.pop %v1430
        %v1488 = vmul.f32 1.0, %v1487
        %v1489 = vrcp.pop %v1431
        %v1490 = vmul.f32 1.0, %v1489
        %v1491 = vrcp.pop %v1432
        %v1492 = vmul.f32 1.0, %v1491
        %v1493 = vrcp.pop %v1433
        %v1494 = vmul.f32 1.0, %v1493
        %v1495 = vrcp.pop %v1434
        %v1496 = vmul.f32 1.0, %v1495
        %v1497 = vrcp.pop %v1435
        %v1498 = vmul.f32 1.0, %v1497
        %v1499 = vrcp.pop %v1436
        %v1500 = vmul.f32 1.0, %v1499
        %v1501 = vtanh.pop %v1072
        %v1502 = vtanh.pop %v1074
        %v1503 = vtanh.pop %v1145
        %v1504 = vtanh.pop %v1147
        %v1505 = vtanh.pop %v1218
        %v1506 = vtanh.pop %v1220
        %v1507 = vtanh.pop %v1291
        %v1508 = vtanh.pop %v1293
        %v1509 = vtanh.pop %v1076
        %v1510 = vtanh.pop %v1078
        %v1511 = vtanh.pop %v1149
        %v1512 = vtanh.pop %v1151
        %v1513 = vtanh.pop %v1222
        %v1514 = vtanh.pop %v1224
        %v1515 = vtanh.pop %v1295
        %v1516 = vtanh.pop %v1297
        %v1517 = vtanh.pop %v1082
        %v1518 = vtanh.pop %v1084
        %v1519 = vtanh.pop %v1155
        %v1520 = vtanh.pop %v1157
        %v1521 = vtanh.pop %v1228
        %v1522 = vtanh.pop %v1230
        %v1523 = vtanh.pop %v1301
        %v1524 = vtanh.pop %v1303
        %v1525 = vtanh.pop %v1086
        %v1526 = vtanh.pop %v1088
        %v1527 = vtanh.pop %v1159
        %v1528 = vtanh.pop %v1161
        %v1529 = vtanh.pop %v1232
        %v1530 = vtanh.pop %v1234
        %v1531 = vtanh.pop %v1305
        %v1532 = vtanh.pop %v1307
        %v1533 = vmul.f32 %v1438, %v1501
        %v1534 = vmul.f32 %v1440, %v1502
        %v1535 = vmul.f32 %v1442, %v1503
        %v1536 = vmul.f32 %v1444, %v1504
        %v1537 = vmul.f32 %v1446, %v1505
        %v1538 = vmul.f32 %v1448, %v1506
        %v1539 = vmul.f32 %v1450, %v1507
        %v1540 = vmul.f32 %v1452, %v1508
        %v1541 = vmul.f32 %v1454, %v1509
        %v1542 = vmul.f32 %v1456, %v1510
        %v1543 = vmul.f32 %v1458, %v1511
        %v1544 = vmul.f32 %v1460, %v1512
        %v1545 = vmul.f32 %v1462, %v1513
        %v1546 = vmul.f32 %v1464, %v1514
        %v1547 = vmul.f32 %v1466, %v1515
        %v1548 = vmul.f32 %v1468, %v1516
        %v1549 = vmul.f32 %v1470, %v1517
        %v1550 = vmul.f32 %v1472, %v1518
        %v1551 = vmul.f32 %v1474, %v1519
        %v1552 = vmul.f32 %v1476, %v1520
        %v1553 = vmul.f32 %v1478, %v1521
        %v1554 = vmul.f32 %v1480, %v1522
        %v1555 = vmul.f32 %v1482, %v1523
        %v1556 = vmul.f32 %v1484, %v1524
        %v1557 = vmul.f32 %v1486, %v1525
        %v1558 = vmul.f32 %v1488, %v1526
        %v1559 = vmul.f32 %v1490, %v1527
        %v1560 = vmul.f32 %v1492, %v1528
        %v1561 = vmul.f32 %v1494, %v1529
        %v1562 = vmul.f32 %v1496, %v1530
        %v1563 = vmul.f32 %v1498, %v1531
        %v1564 = vmul.f32 %v1500, %v1532
        %v1565 = vld [vmem:[%s5] sm:$0xf]
        %v1566 = vld [vmem:[%s5 + $0x4] sm:$0xf]
        %v1567 = vld [vmem:[%s5 + $0x8] sm:$0xf]
        %v1568 = vld [vmem:[%s5 + $0xc] sm:$0xf]
        %v1569 = vld [vmem:[%s5 + $0x10] sm:$0xf]
        %v1570 = vld [vmem:[%s5 + $0x14] sm:$0xf]
        %v1571 = vld [vmem:[%s5 + $0x18] sm:$0xf]
        %v1572 = vld [vmem:[%s5 + $0x1c] sm:$0xf]
        %v1573 = vpack.c.bf16 %v1541, %v1533
        %v1574 = vpack.c.bf16 %v1542, %v1534
        %v1575 = vpack.c.bf16 %v1543, %v1535
        %v1576 = vpack.c.bf16 %v1544, %v1536
        %v1577 = vpack.c.bf16 %v1545, %v1537
        %v1578 = vpack.c.bf16 %v1546, %v1538
        %v1579 = vpack.c.bf16 %v1547, %v1539
        %v1580 = vpack.c.bf16 %v1548, %v1540
        %v1581 = vpack.c.bf16 %v1557, %v1549
        %v1582 = vpack.c.bf16 %v1558, %v1550
        %v1583 = vpack.c.bf16 %v1559, %v1551
        %v1584 = vpack.c.bf16 %v1560, %v1552
        %v1585 = vpack.c.bf16 %v1561, %v1553
        %v1586 = vpack.c.bf16 %v1562, %v1554
        %v1587 = vpack.c.bf16 %v1563, %v1555
        %v1588 = vpack.c.bf16 %v1564, %v1556
        %v1589 = vld [vmem:[%s6] sm:$0xff]
        %v1590 = vld [vmem:[%s6 + $0x8] sm:$0xff]
        %v1591 = vld [vmem:[%s6 + $0x10] sm:$0xff]
        %v1592 = vld [vmem:[%s6 + $0x18] sm:$0xff]
        %v1593 = vld [vmem:[%s6 + $0x20] sm:$0xff]
        %v1594 = vld [vmem:[%s6 + $0x28] sm:$0xff]
        %v1595 = vld [vmem:[%s6 + $0x30] sm:$0xff]
        %v1596 = vld [vmem:[%s6 + $0x38] sm:$0xff]
        %1598 = vset.pattern.permute.xlu0 0
        %1599 = vperm.xlu0 %1598, %v1589
        %v1600 = vpop.permute.xlu0 %1599
        %1603 = vset.pattern.permute.xlu0 0
        %1604 = vperm.xlu0 %1603, %v1590
        %v1605 = vpop.permute.xlu0 %1604
        %1608 = vset.pattern.permute.xlu0 0
        %1609 = vperm.xlu0 %1608, %v1591
        %v1610 = vpop.permute.xlu0 %1609
        %1613 = vset.pattern.permute.xlu0 0
        %1614 = vperm.xlu0 %1613, %v1592
        %v1615 = vpop.permute.xlu0 %1614
        %1618 = vset.pattern.permute.xlu0 0
        %1619 = vperm.xlu0 %1618, %v1593
        %v1620 = vpop.permute.xlu0 %1619
        %1623 = vset.pattern.permute.xlu0 0
        %1624 = vperm.xlu0 %1623, %v1594
        %v1625 = vpop.permute.xlu0 %1624
        %1628 = vset.pattern.permute.xlu0 0
        %1629 = vperm.xlu0 %1628, %v1595
        %v1630 = vpop.permute.xlu0 %1629
        %1633 = vset.pattern.permute.xlu0 0
        %1634 = vperm.xlu0 %1633, %v1596
        %v1635 = vpop.permute.xlu0 %1634
        %v1645 = vunpack.c.l.b16 %v1565
        %v1646 = vunpack.c.l.b16 %v1566
        %v1647 = vunpack.c.l.b16 %v1567
        %v1648 = vunpack.c.l.b16 %v1568
        %v1649 = vunpack.c.l.b16 %v1569
        %v1650 = vunpack.c.l.b16 %v1570
        %v1651 = vunpack.c.l.b16 %v1571
        %v1652 = vunpack.c.l.b16 %v1572
        %v1653 = vpack.c.b16 %v1646, %v1645
        %v1654 = vpack.c.b16 %v1648, %v1647
        %v1655 = vpack.c.b16 %v1650, %v1649
        %v1656 = vpack.c.b16 %v1652, %v1651
        %vm1657 = vcmask 261120
        %v1659 = vsel %vm1657, %v1653, 0
        %v1662 = vsel %vm1657, %v1654, 0
        %v1665 = vsel %vm1657, %v1655, 0
        %v1668 = vsel %vm1657, %v1656, 0
        %1670 = vmatprep.subr.bf16.mxu0 %v1574
        %1671 = vmatpush1.bf16.msra.mxu0 %v1573
        %1672 = vmatprep.subr.bf16.mxu0 %v1582
        %1673 = vmatpush1.bf16.msra.mxu0 %v1581
        %1674 = vmatprep.subr.bf16.mxu0 0
        %1675 = vmatpush1.bf16.msra.mxu0 0
        %1676 = vmatprep.subr.bf16.mxu0 0
        %1677 = vmatpush1.bf16.msra.mxu0 0
        %1678 = vmatprep.subr.bf16.mxu0 0
        %1679 = vmatpush1.bf16.msra.mxu0 0
        %1680 = vmatprep.subr.bf16.mxu0 0
        %1681 = vmatpush1.bf16.msra.mxu0 0
        %1682 = vmatprep.subr.bf16.mxu0 0
        %1683 = vmatpush1.bf16.msra.mxu0 0
        %1684 = vmatprep.subr.bf16.mxu0 0
        %1685 = vmatpush1.bf16.msra.mxu0 0
        %1686 = vmatprep.subr.bf16.mxu0 0
        %1687 = vmatpush1.bf16.msra.mxu0 0
        %1688 = vmatprep.subr.bf16.mxu0 0
        %1689 = vmatpush1.bf16.msra.mxu0 0
        %1690 = vmatprep.subr.bf16.mxu0 0
        %1691 = vmatpush1.bf16.msra.mxu0 0
        %1692 = vmatprep.subr.bf16.mxu0 0
        %1693 = vmatpush1.bf16.msra.mxu0 0
        %1694 = vmatprep.subr.bf16.mxu0 0
        %1695 = vmatpush1.bf16.msra.mxu0 0
        %1696 = vmatprep.subr.bf16.mxu0 0
        %1697 = vmatpush1.bf16.msra.mxu0 0
        %1698 = vmatprep.subr.bf16.mxu0 0
        %1699 = vmatpush1.bf16.msra.mxu0 0
        %1700 = vmatprep.subr.bf16.mxu0 0
        %1701 = vmatpush1.bf16.msra.mxu0 0
        %1702 = vmatprep.mubr.bf16.mxu0 0
        %1703 = vmatmul.mubr.bf16.gmra.mrb[0].mxu0 %v1659
        %v1704 = vpop.f32.mrb[0].mxu0
        %v1705 = vadd.f32 %v1600, %v1704
        %v1706 = vpop.f32.mrb[0].mxu0
        %v1707 = vadd.f32 %v1600, %v1706
        %v1708 = vpop.f32.mrb[0].mxu0
        %v1709 = vadd.f32 %v1605, %v1708
        %v1710 = vpop.f32.mrb[0].mxu0
        %v1711 = vadd.f32 %v1605, %v1710
        %1712 = vmatprep.mubr.bf16.mxu0 0
        %1713 = vmatmul.mubr.bf16.gmra.mrb[0].mxu0 %v1662
        %v1714 = vpop.f32.mrb[0].mxu0
        %v1715 = vadd.f32 %v1610, %v1714
        %v1716 = vpop.f32.mrb[0].mxu0
        %v1717 = vadd.f32 %v1610, %v1716
        %v1718 = vpop.f32.mrb[0].mxu0
        %v1719 = vadd.f32 %v1615, %v1718
        %v1720 = vpop.f32.mrb[0].mxu0
        %v1721 = vadd.f32 %v1615, %v1720
        %1722 = vmatprep.mubr.bf16.mxu0 0
        %1723 = vmatmul.mubr.bf16.gmra.mrb[0].mxu0 %v1665
        %v1724 = vpop.f32.mrb[0].mxu0
        %v1725 = vadd.f32 %v1620, %v1724
        %v1726 = vpop.f32.mrb[0].mxu0
        %v1727 = vadd.f32 %v1620, %v1726
        %v1728 = vpop.f32.mrb[0].mxu0
        %v1729 = vadd.f32 %v1625, %v1728
        %v1730 = vpop.f32.mrb[0].mxu0
        %v1731 = vadd.f32 %v1625, %v1730
        %1732 = vmatprep.mubr.bf16.mxu0 0
        %1733 = vmatmul.mubr.bf16.gmra.mrb[0].mxu0 %v1668
        %v1734 = vpop.f32.mrb[0].mxu0
        %v1735 = vadd.f32 %v1630, %v1734
        %v1736 = vpop.f32.mrb[0].mxu0
        %v1737 = vadd.f32 %v1630, %v1736
        %v1738 = vpop.f32.mrb[0].mxu0
        %v1739 = vadd.f32 %v1635, %v1738
        %v1740 = vpop.f32.mrb[0].mxu0
        %v1741 = vadd.f32 %v1635, %v1740
        %1742 = vdwg.mxu0
        %1743 = vmatprep.subr.bf16.mxu0 %v1576
        %1744 = vmatpush1.bf16.msra.mxu0 %v1575
        %1745 = vmatprep.subr.bf16.mxu0 %v1584
        %1746 = vmatpush1.bf16.msra.mxu0 %v1583
        %1747 = vmatprep.subr.bf16.mxu0 0
        %1748 = vmatpush1.bf16.msra.mxu0 0
        %1749 = vmatprep.subr.bf16.mxu0 0
        %1750 = vmatpush1.bf16.msra.mxu0 0
        %1751 = vmatprep.subr.bf16.mxu0 0
        %1752 = vmatpush1.bf16.msra.mxu0 0
        %1753 = vmatprep.subr.bf16.mxu0 0
        %1754 = vmatpush1.bf16.msra.mxu0 0
        %1755 = vmatprep.subr.bf16.mxu0 0
        %1756 = vmatpush1.bf16.msra.mxu0 0
        %1757 = vmatprep.subr.bf16.mxu0 0
        %1758 = vmatpush1.bf16.msra.mxu0 0
        %1759 = vmatprep.subr.bf16.mxu0 0
        %1760 = vmatpush1.bf16.msra.mxu0 0
        %1761 = vmatprep.subr.bf16.mxu0 0
        %1762 = vmatpush1.bf16.msra.mxu0 0
        %1763 = vmatprep.subr.bf16.mxu0 0
        %1764 = vmatpush1.bf16.msra.mxu0 0
        %1765 = vmatprep.subr.bf16.mxu0 0
        %1766 = vmatpush1.bf16.msra.mxu0 0
        %1767 = vmatprep.subr.bf16.mxu0 0
        %1768 = vmatpush1.bf16.msra.mxu0 0
        %1769 = vmatprep.subr.bf16.mxu0 0
        %1770 = vmatpush1.bf16.msra.mxu0 0
        %1771 = vmatprep.subr.bf16.mxu0 0
        %1772 = vmatpush1.bf16.msra.mxu0 0
        %1773 = vmatprep.subr.bf16.mxu0 0
        %1774 = vmatpush1.bf16.msra.mxu0 0
        %1775 = vmatprep.mubr.bf16.mxu0 0
        %1776 = vmatmul.mubr.bf16.gmra.mrb[0].mxu0 %v1659
        %v1777 = vpop.f32.mrb[0].mxu0
        %v1778 = vadd.f32 %v1600, %v1777
        %v1779 = vpop.f32.mrb[0].mxu0
        %v1780 = vadd.f32 %v1600, %v1779
        %v1781 = vpop.f32.mrb[0].mxu0
        %v1782 = vadd.f32 %v1605, %v1781
        %v1783 = vpop.f32.mrb[0].mxu0
        %v1784 = vadd.f32 %v1605, %v1783
        %1785 = vmatprep.mubr.bf16.mxu0 0
        %1786 = vmatmul.mubr.bf16.gmra.mrb[0].mxu0 %v1662
        %v1787 = vpop.f32.mrb[0].mxu0
        %v1788 = vadd.f32 %v1610, %v1787
        %v1789 = vpop.f32.mrb[0].mxu0
        %v1790 = vadd.f32 %v1610, %v1789
        %v1791 = vpop.f32.mrb[0].mxu0
        %v1792 = vadd.f32 %v1615, %v1791
        %v1793 = vpop.f32.mrb[0].mxu0
        %v1794 = vadd.f32 %v1615, %v1793
        %1795 = vmatprep.mubr.bf16.mxu0 0
        %1796 = vmatmul.mubr.bf16.gmra.mrb[0].mxu0 %v1665
        %v1797 = vpop.f32.mrb[0].mxu0
        %v1798 = vadd.f32 %v1620, %v1797
        %v1799 = vpop.f32.mrb[0].mxu0
        %v1800 = vadd.f32 %v1620, %v1799
        %v1801 = vpop.f32.mrb[0].mxu0
        %v1802 = vadd.f32 %v1625, %v1801
        %v1803 = vpop.f32.mrb[0].mxu0
        %v1804 = vadd.f32 %v1625, %v1803
        %1805 = vmatprep.mubr.bf16.mxu0 0
        %1806 = vmatmul.mubr.bf16.gmra.mrb[0].mxu0 %v1668
        %v1807 = vpop.f32.mrb[0].mxu0
        %v1808 = vadd.f32 %v1630, %v1807
        %v1809 = vpop.f32.mrb[0].mxu0
        %v1810 = vadd.f32 %v1630, %v1809
        %v1811 = vpop.f32.mrb[0].mxu0
        %v1812 = vadd.f32 %v1635, %v1811
        %v1813 = vpop.f32.mrb[0].mxu0
        %v1814 = vadd.f32 %v1635, %v1813
        %1815 = vdwg.mxu0
        %1816 = vmatprep.subr.bf16.mxu0 %v1578
        %1817 = vmatpush1.bf16.msra.mxu0 %v1577
        %1818 = vmatprep.subr.bf16.mxu0 %v1586
        %1819 = vmatpush1.bf16.msra.mxu0 %v1585
        %1820 = vmatprep.subr.bf16.mxu0 0
        %1821 = vmatpush1.bf16.msra.mxu0 0
        %1822 = vmatprep.subr.bf16.mxu0 0
        %1823 = vmatpush1.bf16.msra.mxu0 0
        %1824 = vmatprep.subr.bf16.mxu0 0
        %1825 = vmatpush1.bf16.msra.mxu0 0
        %1826 = vmatprep.subr.bf16.mxu0 0
        %1827 = vmatpush1.bf16.msra.mxu0 0
        %1828 = vmatprep.subr.bf16.mxu0 0
        %1829 = vmatpush1.bf16.msra.mxu0 0
        %1830 = vmatprep.subr.bf16.mxu0 0
        %1831 = vmatpush1.bf16.msra.mxu0 0
        %1832 = vmatprep.subr.bf16.mxu0 0
        %1833 = vmatpush1.bf16.msra.mxu0 0
        %1834 = vmatprep.subr.bf16.mxu0 0
        %1835 = vmatpush1.bf16.msra.mxu0 0
        %1836 = vmatprep.subr.bf16.mxu0 0
        %1837 = vmatpush1.bf16.msra.mxu0 0
        %1838 = vmatprep.subr.bf16.mxu0 0
        %1839 = vmatpush1.bf16.msra.mxu0 0
        %1840 = vmatprep.subr.bf16.mxu0 0
        %1841 = vmatpush1.bf16.msra.mxu0 0
        %1842 = vmatprep.subr.bf16.mxu0 0
        %1843 = vmatpush1.bf16.msra.mxu0 0
        %1844 = vmatprep.subr.bf16.mxu0 0
        %1845 = vmatpush1.bf16.msra.mxu0 0
        %1846 = vmatprep.subr.bf16.mxu0 0
        %1847 = vmatpush1.bf16.msra.mxu0 0
        %1848 = vmatprep.mubr.bf16.mxu0 0
        %1849 = vmatmul.mubr.bf16.gmra.mrb[0].mxu0 %v1659
        %v1850 = vpop.f32.mrb[0].mxu0
        %v1851 = vadd.f32 %v1600, %v1850
        %v1852 = vpop.f32.mrb[0].mxu0
        %v1853 = vadd.f32 %v1600, %v1852
        %v1854 = vpop.f32.mrb[0].mxu0
        %v1855 = vadd.f32 %v1605, %v1854
        %v1856 = vpop.f32.mrb[0].mxu0
        %v1857 = vadd.f32 %v1605, %v1856
        %1858 = vmatprep.mubr.bf16.mxu0 0
        %1859 = vmatmul.mubr.bf16.gmra.mrb[0].mxu0 %v1662
        %v1860 = vpop.f32.mrb[0].mxu0
        %v1861 = vadd.f32 %v1610, %v1860
        %v1862 = vpop.f32.mrb[0].mxu0
        %v1863 = vadd.f32 %v1610, %v1862
        %v1864 = vpop.f32.mrb[0].mxu0
        %v1865 = vadd.f32 %v1615, %v1864
        %v1866 = vpop.f32.mrb[0].mxu0
        %v1867 = vadd.f32 %v1615, %v1866
        %1868 = vmatprep.mubr.bf16.mxu0 0
        %1869 = vmatmul.mubr.bf16.gmra.mrb[0].mxu0 %v1665
        %v1870 = vpop.f32.mrb[0].mxu0
        %v1871 = vadd.f32 %v1620, %v1870
        %v1872 = vpop.f32.mrb[0].mxu0
        %v1873 = vadd.f32 %v1620, %v1872
        %v1874 = vpop.f32.mrb[0].mxu0
        %v1875 = vadd.f32 %v1625, %v1874
        %v1876 = vpop.f32.mrb[0].mxu0
        %v1877 = vadd.f32 %v1625, %v1876
        %1878 = vmatprep.mubr.bf16.mxu0 0
        %1879 = vmatmul.mubr.bf16.gmra.mrb[0].mxu0 %v1668
        %v1880 = vpop.f32.mrb[0].mxu0
        %v1881 = vadd.f32 %v1630, %v1880
        %v1882 = vpop.f32.mrb[0].mxu0
        %v1883 = vadd.f32 %v1630, %v1882
        %v1884 = vpop.f32.mrb[0].mxu0
        %v1885 = vadd.f32 %v1635, %v1884
        %v1886 = vpop.f32.mrb[0].mxu0
        %v1887 = vadd.f32 %v1635, %v1886
        %1888 = vdwg.mxu0
        %1889 = vmatprep.subr.bf16.mxu0 %v1580
        %1890 = vmatpush1.bf16.msra.mxu0 %v1579
        %1891 = vmatprep.subr.bf16.mxu0 %v1588
        %1892 = vmatpush1.bf16.msra.mxu0 %v1587
        %1893 = vmatprep.subr.bf16.mxu0 0
        %1894 = vmatpush1.bf16.msra.mxu0 0
        %1895 = vmatprep.subr.bf16.mxu0 0
        %1896 = vmatpush1.bf16.msra.mxu0 0
        %1897 = vmatprep.subr.bf16.mxu0 0
        %1898 = vmatpush1.bf16.msra.mxu0 0
        %1899 = vmatprep.subr.bf16.mxu0 0
        %1900 = vmatpush1.bf16.msra.mxu0 0
        %1901 = vmatprep.subr.bf16.mxu0 0
        %1902 = vmatpush1.bf16.msra.mxu0 0
        %1903 = vmatprep.subr.bf16.mxu0 0
        %1904 = vmatpush1.bf16.msra.mxu0 0
        %1905 = vmatprep.subr.bf16.mxu0 0
        %1906 = vmatpush1.bf16.msra.mxu0 0
        %1907 = vmatprep.subr.bf16.mxu0 0
        %1908 = vmatpush1.bf16.msra.mxu0 0
        %1909 = vmatprep.subr.bf16.mxu0 0
        %1910 = vmatpush1.bf16.msra.mxu0 0
        %1911 = vmatprep.subr.bf16.mxu0 0
        %1912 = vmatpush1.bf16.msra.mxu0 0
        %1913 = vmatprep.subr.bf16.mxu0 0
        %1914 = vmatpush1.bf16.msra.mxu0 0
        %1915 = vmatprep.subr.bf16.mxu0 0
        %1916 = vmatpush1.bf16.msra.mxu0 0
        %1917 = vmatprep.subr.bf16.mxu0 0
        %1918 = vmatpush1.bf16.msra.mxu0 0
        %1919 = vmatprep.subr.bf16.mxu0 0
        %1920 = vmatpush1.bf16.msra.mxu0 0
        %1921 = vmatprep.mubr.bf16.mxu0 0
        %1922 = vmatmul.mubr.bf16.gmra.mrb[0].mxu0 %v1659
        %v1923 = vpop.f32.mrb[0].mxu0
        %v1924 = vadd.f32 %v1600, %v1923
        %v1925 = vpop.f32.mrb[0].mxu0
        %v1926 = vadd.f32 %v1600, %v1925
        %v1927 = vpop.f32.mrb[0].mxu0
        %v1928 = vadd.f32 %v1605, %v1927
        %v1929 = vpop.f32.mrb[0].mxu0
        %v1930 = vadd.f32 %v1605, %v1929
        %1931 = vmatprep.mubr.bf16.mxu0 0
        %1932 = vmatmul.mubr.bf16.gmra.mrb[0].mxu0 %v1662
        %v1933 = vpop.f32.mrb[0].mxu0
        %v1934 = vadd.f32 %v1610, %v1933
        %v1935 = vpop.f32.mrb[0].mxu0
        %v1936 = vadd.f32 %v1610, %v1935
        %v1937 = vpop.f32.mrb[0].mxu0
        %v1938 = vadd.f32 %v1615, %v1937
        %v1939 = vpop.f32.mrb[0].mxu0
        %v1940 = vadd.f32 %v1615, %v1939
        %1941 = vmatprep.mubr.bf16.mxu0 0
        %1942 = vmatmul.mubr.bf16.gmra.mrb[0].mxu0 %v1665
        %v1943 = vpop.f32.mrb[0].mxu0
        %v1944 = vadd.f32 %v1620, %v1943
        %v1945 = vpop.f32.mrb[0].mxu0
        %v1946 = vadd.f32 %v1620, %v1945
        %v1947 = vpop.f32.mrb[0].mxu0
        %v1948 = vadd.f32 %v1625, %v1947
        %v1949 = vpop.f32.mrb[0].mxu0
        %v1950 = vadd.f32 %v1625, %v1949
        %1951 = vmatprep.mubr.bf16.mxu0 0
        %1952 = vmatmul.mubr.bf16.gmra.mrb[0].mxu0 %v1668
        %v1953 = vpop.f32.mrb[0].mxu0
        %v1954 = vadd.f32 %v1630, %v1953
        %v1955 = vpop.f32.mrb[0].mxu0
        %v1956 = vadd.f32 %v1630, %v1955
        %v1957 = vpop.f32.mrb[0].mxu0
        %v1958 = vadd.f32 %v1635, %v1957
        %v1959 = vpop.f32.mrb[0].mxu0
        %v1960 = vadd.f32 %v1635, %v1959
        %1961 = vdwg.mxu0
        %v1962 = vadd.f32 %v438, %v1705
        %v1963 = vadd.f32 %v439, %v1707
        %v1964 = vadd.f32 %v440, %v1778
        %v1965 = vadd.f32 %v441, %v1780
        %v1966 = vadd.f32 %v442, %v1851
        %v1967 = vadd.f32 %v443, %v1853
        %v1968 = vadd.f32 %v444, %v1924
        %v1969 = vadd.f32 %v445, %v1926
        %v1970 = vadd.f32 %v446, %v1709
        %v1971 = vadd.f32 %v447, %v1711
        %v1972 = vadd.f32 %v448, %v1782
        %v1973 = vadd.f32 %v449, %v1784
        %v1974 = vadd.f32 %v450, %v1855
        %v1975 = vadd.f32 %v451, %v1857
        %v1976 = vadd.f32 %v452, %v1928
        %v1977 = vadd.f32 %v453, %v1930
        %v1978 = vadd.f32 %v454, %v1715
        %v1979 = vadd.f32 %v455, %v1717
        %v1980 = vadd.f32 %v456, %v1788
        %v1981 = vadd.f32 %v457, %v1790
        %v1982 = vadd.f32 %v458, %v1861
        %v1983 = vadd.f32 %v459, %v1863
        %v1984 = vadd.f32 %v460, %v1934
        %v1985 = vadd.f32 %v461, %v1936
        %v1986 = vadd.f32 %v462, %v1719
        %v1987 = vadd.f32 %v463, %v1721
        %v1988 = vadd.f32 %v464, %v1792
        %v1989 = vadd.f32 %v465, %v1794
        %v1990 = vadd.f32 %v466, %v1865
        %v1991 = vadd.f32 %v467, %v1867
        %v1992 = vadd.f32 %v468, %v1938
        %v1993 = vadd.f32 %v469, %v1940
        %v1994 = vmul.f32 %v1962, 0.70710677
        %v1995 = vmul.f32 %v1963, 0.70710677
        %v1996 = vmul.f32 %v1964, 0.70710677
        %v1997 = vmul.f32 %v1965, 0.70710677
        %v1998 = vmul.f32 %v1966, 0.70710677
        %v1999 = vmul.f32 %v1967, 0.70710677
        %v2000 = vmul.f32 %v1968, 0.70710677
        %v2001 = vmul.f32 %v1969, 0.70710677
        %v2002 = vmul.f32 %v1970, 0.70710677
        %v2003 = vmul.f32 %v1971, 0.70710677
        %v2004 = vmul.f32 %v1972, 0.70710677
        %v2005 = vmul.f32 %v1973, 0.70710677
        %v2006 = vmul.f32 %v1974, 0.70710677
        %v2007 = vmul.f32 %v1975, 0.70710677
        %v2008 = vmul.f32 %v1976, 0.70710677
        %v2009 = vmul.f32 %v1977, 0.70710677
        %v2010 = vmul.f32 %v1978, 0.70710677
        %v2011 = vmul.f32 %v1979, 0.70710677
        %v2012 = vmul.f32 %v1980, 0.70710677
        %v2013 = vmul.f32 %v1981, 0.70710677
        %v2014 = vmul.f32 %v1982, 0.70710677
        %v2015 = vmul.f32 %v1983, 0.70710677
        %v2016 = vmul.f32 %v1984, 0.70710677
        %v2017 = vmul.f32 %v1985, 0.70710677
        %v2018 = vmul.f32 %v1986, 0.70710677
        %v2019 = vmul.f32 %v1987, 0.70710677
        %v2020 = vmul.f32 %v1988, 0.70710677
        %v2021 = vmul.f32 %v1989, 0.70710677
        %v2022 = vmul.f32 %v1990, 0.70710677
        %v2023 = vmul.f32 %v1991, 0.70710677
        %v2024 = vmul.f32 %v1992, 0.70710677
        %v2025 = vmul.f32 %v1993, 0.70710677
        %2026 = vst [vmem:[%s416] sm:$0xff] %v1994
        %2027 = vst [vmem:[%s416 + $0x8] sm:$0xff] %v1995
        %2028 = vst [vmem:[%s416 + $0x10] sm:$0xff] %v1996
        %2029 = vst [vmem:[%s416 + $0x18] sm:$0xff] %v1997
        %2030 = vst [vmem:[%s416 + $0x20] sm:$0xff] %v1998
        %2031 = vst [vmem:[%s416 + $0x28] sm:$0xff] %v1999
        %2032 = vst [vmem:[%s416 + $0x30] sm:$0xff] %v2000
        %2033 = vst [vmem:[%s416 + $0x38] sm:$0xff] %v2001
        %2034 = vst [vmem:[%s416 + $0x40] sm:$0xff] %v2002
        %2035 = vst [vmem:[%s416 + $0x48] sm:$0xff] %v2003
        %2036 = vst [vmem:[%s416 + $0x50] sm:$0xff] %v2004
        %2037 = vst [vmem:[%s416 + $0x58] sm:$0xff] %v2005
        %2038 = vst [vmem:[%s416 + $0x60] sm:$0xff] %v2006
        %2039 = vst [vmem:[%s416 + $0x68] sm:$0xff] %v2007
        %2040 = vst [vmem:[%s416 + $0x70] sm:$0xff] %v2008
        %2041 = vst [vmem:[%s416 + $0x78] sm:$0xff] %v2009
        %2042 = vst [vmem:[%s416 + $0x80] sm:$0xff] %v2010
        %2043 = vst [vmem:[%s416 + $0x88] sm:$0xff] %v2011
        %2044 = vst [vmem:[%s416 + $0x90] sm:$0xff] %v2012
        %2045 = vst [vmem:[%s416 + $0x98] sm:$0xff] %v2013
        %2046 = vst [vmem:[%s416 + $0xa0] sm:$0xff] %v2014
        %2047 = vst [vmem:[%s416 + $0xa8] sm:$0xff] %v2015
        %2048 = vst [vmem:[%s416 + $0xb0] sm:$0xff] %v2016
        %2049 = vst [vmem:[%s416 + $0xb8] sm:$0xff] %v2017
        %2050 = vst [vmem:[%s416 + $0xc0] sm:$0xff] %v2018
        %2051 = vst [vmem:[%s416 + $0xc8] sm:$0xff] %v2019
        %2052 = vst [vmem:[%s416 + $0xd0] sm:$0xff] %v2020
        %2053 = vst [vmem:[%s416 + $0xd8] sm:$0xff] %v2021
        %2054 = vst [vmem:[%s416 + $0xe0] sm:$0xff] %v2022
        %2055 = vst [vmem:[%s416 + $0xe8] sm:$0xff] %v2023
        %2056 = vst [vmem:[%s416 + $0xf0] sm:$0xff] %v2024
        %2057 = vst [vmem:[%s416 + $0xf8] sm:$0xff] %v2025
        %2058 = vst [vmem:[%s423] sm:$0xff] %v1725
        %2059 = vst [vmem:[%s423 + $0x8] sm:$0xff] %v1727
        %2060 = vst [vmem:[%s423 + $0x10] sm:$0xff] %v1798
        %2061 = vst [vmem:[%s423 + $0x18] sm:$0xff] %v1800
        %2062 = vst [vmem:[%s423 + $0x20] sm:$0xff] %v1871
        %2063 = vst [vmem:[%s423 + $0x28] sm:$0xff] %v1873
        %2064 = vst [vmem:[%s423 + $0x30] sm:$0xff] %v1944
        %2065 = vst [vmem:[%s423 + $0x38] sm:$0xff] %v1946
        %2066 = vst [vmem:[%s423 + $0x40] sm:$0xff] %v1729
        %2067 = vst [vmem:[%s423 + $0x48] sm:$0xff] %v1731
        %2068 = vst [vmem:[%s423 + $0x50] sm:$0xff] %v1802
        %2069 = vst [vmem:[%s423 + $0x58] sm:$0xff] %v1804
        %2070 = vst [vmem:[%s423 + $0x60] sm:$0xff] %v1875
        %2071 = vst [vmem:[%s423 + $0x68] sm:$0xff] %v1877
        %2072 = vst [vmem:[%s423 + $0x70] sm:$0xff] %v1948
        %2073 = vst [vmem:[%s423 + $0x78] sm:$0xff] %v1950
        %2074 = vst [vmem:[%s423 + $0x80] sm:$0xff] %v1735
        %2075 = vst [vmem:[%s423 + $0x88] sm:$0xff] %v1737
        %2076 = vst [vmem:[%s423 + $0x90] sm:$0xff] %v1808
        %2077 = vst [vmem:[%s423 + $0x98] sm:$0xff] %v1810
        %2078 = vst [vmem:[%s423 + $0xa0] sm:$0xff] %v1881
        %2079 = vst [vmem:[%s423 + $0xa8] sm:$0xff] %v1883
        %2080 = vst [vmem:[%s423 + $0xb0] sm:$0xff] %v1954
        %2081 = vst [vmem:[%s423 + $0xb8] sm:$0xff] %v1956
        %2082 = vst [vmem:[%s423 + $0xc0] sm:$0xff] %v1739
        %2083 = vst [vmem:[%s423 + $0xc8] sm:$0xff] %v1741
        %2084 = vst [vmem:[%s423 + $0xd0] sm:$0xff] %v1812
        %2085 = vst [vmem:[%s423 + $0xd8] sm:$0xff] %v1814
        %2086 = vst [vmem:[%s423 + $0xe0] sm:$0xff] %v1885
        %2087 = vst [vmem:[%s423 + $0xe8] sm:$0xff] %v1887
        %2088 = vst [vmem:[%s423 + $0xf0] sm:$0xff] %v1958
        %2089 = vst [vmem:[%s423 + $0xf8] sm:$0xff] %v1960
        %s2090 = sand.u32 %s222, 1
        %s2091 = scalar_lea.sflag [#allocation5], %s2090
        %s2092 = sand.u32 %s222, 1
        %s2093 = smul.addr %s2092, 256
        %s2094 = scalar_lea.vmem [#allocation8], %s2093
        %s2095 = sand.u32 %s250, 1
        %s2096 = scalar_lea.sflag [#allocation10], %s2095
        %s2097 = sand.u32 %s250, 1
        %s2098 = smul.addr %s2097, 256
        %s2099 = scalar_lea.vmem [#allocation9], %s2098
        // Predicated region
        $region57: #{tpu_custom_call.1} parent=47 // pred_check
          %p2100 = pneg %p232
        $region58: #{tpu_custom_call.1} parent=47 // pred_check_branch
          %2102 = sbr.rel (%p2100) target = $region60
        $region59: #{tpu_custom_call.1} parent=47 // pred_region
          %s2103 = smul.u32 8, %s37
          %s2105 = ssub.s32 4096, 4096
          %2106 = vsyncadd %s2091, %s2105
          %s2107 = smul.addr %s36, 64
          %s2108 = sadd.s32 %s2103, %s2107
          %s2109 = smul.addr %s2108, 128
          %s2110 = scalar_lea.hbm %s7, %s2109
          %s2111 = sshll.u32 %s2094, 4
          %s2112 = int_to_ptr.vmem [resolvable:$true] %s2111
          %2117 = dma.vmem_to_hbm [thread:$0]  %s2112, 4096, %s2110, %s2091, 1024, 2048, 64
        $region60: #{tpu_custom_call.1} parent=47 // pred_fallthru
          _
        // Predicated region
        $region61: #{tpu_custom_call.1} parent=47 // pred_check
          %p2118 = pneg %p260
        $region62: #{tpu_custom_call.1} parent=47 // pred_check_branch
          %2120 = sbr.rel (%p2118) target = $region64
        $region63: #{tpu_custom_call.1} parent=47 // pred_region
          %s2121 = smul.u32 8, %s37
          %s2123 = ssub.s32 4096, 4096
          %2124 = vsyncadd %s2096, %s2123
          %s2125 = smul.addr %s36, 64
          %s2126 = sadd.s32 %s2121, %s2125
          %s2127 = smul.addr %s2126, 128
          %s2128 = scalar_lea.hbm %s8, %s2127
          %s2129 = sshll.u32 %s2099, 4
          %s2130 = int_to_ptr.vmem [resolvable:$true] %s2129
          %2135 = dma.vmem_to_hbm [thread:$0]  %s2130, 4096, %s2128, %s2096, 1024, 2048, 64
        $region64: #{tpu_custom_call.1} parent=47 // pred_fallthru
          _
      $region48: #{tpu_custom_call.1} parent=5 // pred_fallthru
        _
      %p2136 = scmp.le.s32.totalorder 2, %s27
      // Predicated region
      $region65: #{tpu_custom_call.1} parent=5 // pred_check
        %p2137 = pneg %p2136
      $region66: #{tpu_custom_call.1} parent=5 // pred_check_branch
        %2139 = sbr.rel (%p2137) target = $region68
      $region67: #{tpu_custom_call.1} parent=5 // pred_region
        %s2140 = ssub.s32 %s27, 2
        // Predicated region
        $region69: #{tpu_custom_call.1} parent=67 // pred_check
          %p2141 = pneg %p238
        $region70: #{tpu_custom_call.1} parent=67 // pred_check_branch
          %2143 = sbr.rel (%p2141) target = $region72
        $region71: #{tpu_custom_call.1} parent=67 // pred_region
          %s2144 = sand.u32 %s223, 1
          %s2145 = scalar_lea.sflag [#allocation5], %s2144
          %s2146 = sand.u32 %s223, 1
          %s2147 = smul.addr %s2146, 256
          %s2148 = scalar_lea.vmem [#allocation8], %s2147
          %2149 = dma.done %s2145, 4096
        $region72: #{tpu_custom_call.1} parent=67 // pred_fallthru
          _
        // Predicated region
        $region73: #{tpu_custom_call.1} parent=67 // pred_check
          %p2150 = pneg %p266
        $region74: #{tpu_custom_call.1} parent=67 // pred_check_branch
          %2152 = sbr.rel (%p2150) target = $region76
        $region75: #{tpu_custom_call.1} parent=67 // pred_region
          %s2153 = sand.u32 %s251, 1
          %s2154 = scalar_lea.sflag [#allocation10], %s2153
          %s2155 = sand.u32 %s251, 1
          %s2156 = smul.addr %s2155, 256
          %s2157 = scalar_lea.vmem [#allocation9], %s2156
          %2158 = dma.done %s2154, 4096
        $region76: #{tpu_custom_call.1} parent=67 // pred_fallthru
          _
      $region68: #{tpu_custom_call.1} parent=5 // pred_fallthru
        _
    $region6: #{tpu_custom_call.1} parent=1 // loop_footer
      %s31 = sadd.s32 1, %s27
    $region7: #{tpu_custom_call.1} parent=1 // loop_footer_branch
      %26 = sbr.rel target = $region3
    $region8: #{tpu_custom_call.1} parent=1 // loop_exit
      _
    %2159 = vsyncpa [#allocation4], 1
    %s2160 = scalar_lea.sflag [#allocation4], 1
    %2161 = vsyncpa %s2160, 1
    %2162 = vsyncpa [#allocation7], 1
    %s2163 = scalar_lea.sflag [#allocation7], 1
    %2164 = vsyncpa %s2163, 1
    %2165 = vsyncpa [#allocation5], 1
    %s2166 = scalar_lea.sflag [#allocation5], 1
    %2167 = vsyncpa %s2166, 1
    %2168 = vsyncpa [#allocation10], 1
    %s2169 = scalar_lea.sflag [#allocation10], 1
    %2170 = vsyncpa %s2169, 1

</llo_original>
